<compile_context>
chip_gen: v5e
topology: v5e:2x2
jax: 0.10.0
libtpu: 0.0.40
codegen_flags: <defaults>
</compile_context>

<pallas_src>
import functools
import math

import jax
import jax.numpy as jnp
from jax.experimental import pallas as pl
from jax.experimental.pallas import tpu as pltpu


# Indices into the packed per-layer vector bundle (see _pack_params).
_BQ, _BK, _BV, _BO, _G1, _BE1, _B2, _G2, _BE2 = range(9)


# ----------------------------------------------------------------------------
# Fused multi-layer encoder kernel.  grid = (batch_block, layer).
# ----------------------------------------------------------------------------
def _encoder_kernel(
    x_ref,            # (Bb, S, D)   input activations (consumed at layer 0)
    wqkv_ref,         # (1, 3, D, D) bf16  fused QKV weights (Q pre-scaled)
    wo_ref,           # (1, D, D)    bf16  output projection
    w1_ref,           # (1, D, F)    bf16  FFN in
    w2_ref,           # (1, F, D)    bf16  FFN out
    vecs_ref,         # (1, 9, D)    f32   packed biases / LN affines
    b1_ref,           # (1, 1, F)    f32   FFN hidden bias
    o_ref,            # (Bb, S, D)   output (written on the last layer only)
    act_ref,          # (Bb*S, D)    f32 VMEM scratch: layer->layer carry
    ctx_ref,          # (Bb*S, D)    f32 VMEM scratch: attention context
    *, num_heads: int, seq_len: int, eps: float = 1e-5,
):
    layer = pl.program_id(1)
    M, D = act_ref.shape
    S = seq_len
    Bb = M // S
    H = num_heads
    dk = D // H

    # First layer of this batch block: bring the input into the VMEM carry.
    # (Layer axis is innermost, so layer == 0 re-fires for every batch block.)
    @pl.when(layer == 0)
    def _():
        for b in range(Bb):
            act_ref[b * S:(b + 1) * S, :] = x_ref[b].astype(jnp.float32)

    x = act_ref[...]                        # (M, D) f32, M = Bb*S
    xb = x.astype(jnp.bfloat16)             # MXU operand
    vecs = vecs_ref[0]                      # (9, D) f32

    def row(i):                             # (1, D) row -> broadcasts over M
        return vecs[i:i + 1, :]

    def layer_norm(v, gamma, beta):         # one-pass variance
        mean = jnp.mean(v, axis=-1, keepdims=True)
        var = jnp.mean(v * v, axis=-1, keepdims=True) - mean * mean
        return (v - mean) * jax.lax.rsqrt(var + eps) * gamma + beta

    # ---- Multi-head self-attention ------------------------------------------
    # Fused QKV weights arrive as one bf16 DMA; 1/sqrt(dk) folded into Q.
    wqkv = wqkv_ref[0]                      # (3, D, D) bf16
    q = jnp.dot(xb, wqkv[0], preferred_element_type=jnp.float32) + row(_BQ)
    k = jnp.dot(xb, wqkv[1], preferred_element_type=jnp.float32) + row(_BK)
    v = jnp.dot(xb, wqkv[2], preferred_element_type=jnp.float32) + row(_BV)

    # Per-(batch, head) scores / softmax / context with 2-D matmuls; contexts
    # are assembled into ctx_ref so the output projection below is a SINGLE
    # [M, D] @ [D, D] matmul (heads-concat folded in, no serial add chain).
    for b in range(Bb):
        r0 = b * S
        for h in range(H):
            c0 = h * dk
            qh = q[r0:r0 + S, c0:c0 + dk]
            kh = k[r0:r0 + S, c0:c0 + dk]
            vh = v[r0:r0 + S, c0:c0 + dk]
            s = jax.lax.dot_general(qh, kh, (((1,), (1,)), ((), ())),
                                    preferred_element_type=jnp.float32)
            s = s - jnp.max(s, axis=-1, keepdims=True)
            e = jnp.exp(s)
            p = e * pl.reciprocal(jnp.sum(e, axis=-1, keepdims=True), approx=True)
            ctx_ref[r0:r0 + S, c0:c0 + dk] = jnp.dot(
                p, vh, preferred_element_type=jnp.float32)

    attn = jnp.dot(ctx_ref[...].astype(jnp.bfloat16), wo_ref[0],
                   preferred_element_type=jnp.float32) + row(_BO)
    x1 = layer_norm(x + attn, row(_G1), row(_BE1))

    # ---- Feed-forward --------------------------------------------------------
    h1 = jnp.dot(x1.astype(jnp.bfloat16), w1_ref[0],
                 preferred_element_type=jnp.float32) + b1_ref[0]
    h1 = jnp.maximum(h1, 0.0)               # ReLU
    ff = jnp.dot(h1.astype(jnp.bfloat16), w2_ref[0],
                 preferred_element_type=jnp.float32) + row(_B2)
    y = layer_norm(x1 + ff, row(_G2), row(_BE2))

    act_ref[...] = y                        # carry to the next layer

    # Only the last layer writes the (VMEM-resident) output block.
    @pl.when(layer == pl.num_programs(1) - 1)
    def _():
        for b in range(Bb):
            o_ref[b] = y[b * S:(b + 1) * S, :].astype(o_ref.dtype)


# ----------------------------------------------------------------------------
# Host-side parameter packing + wrapper
# ----------------------------------------------------------------------------
def _pack_params(layer_params, num_heads):
    """Stack per-layer params, fuse QKV, fold attention scale into Q, cast the
    big matmul weights to bf16, and pack the 9 D-sized vectors into one array."""
    d_model = layer_params[0]["wq"].shape[0]
    dk = d_model // num_heads
    scale = 1.0 / math.sqrt(dk)

    wqkv, wo, w1, w2, vecs, b1 = [], [], [], [], [], []
    for p in layer_params:
        wqkv.append(jnp.stack([p["wq"] * scale, p["wk"], p["wv"]], axis=0))
        wo.append(p["wo"])
        w1.append(p["w1"])
        w2.append(p["w2"])
        vecs.append(jnp.stack([p["bq"] * scale, p["bk"], p["bv"], p["bo"],
                               p["g1"], p["beta1"], p["b2"], p["g2"], p["beta2"]],
                              axis=0))
        b1.append(p["b1"][None, :])

    to_bf16 = lambda xs: jnp.stack(xs, axis=0).astype(jnp.bfloat16)
    to_f32 = lambda xs: jnp.stack(xs, axis=0).astype(jnp.float32)
    return (to_bf16(wqkv), to_bf16(wo), to_bf16(w1), to_bf16(w2),
            to_f32(vecs), to_f32(b1))


def _layer_spec(arr):
    """BlockSpec selecting one layer's slice of an [N, ...] stacked parameter."""
    zeros = (0,) * (arr.ndim - 1)
    return pl.BlockSpec((1,) + tuple(arr.shape[1:]),
                        lambda b, l, _z=zeros: (l,) + _z)


@functools.partial(jax.jit, static_argnums=(2, 3))
def encoder_forward(x, layer_params, num_heads, batch_blocks=1):
    """Full encoder stack in one pallas_call.

    batch_blocks=1 folds the whole batch into the matmul M dim (best weight
    reuse; right choice on single-TC v5e/v6e).  Use batch_blocks=2 on v7x so
    both TensorCores receive a 'parallel' block.
    """
    B, S, D = x.shape
    assert B % batch_blocks == 0
    Bb = B // batch_blocks

    weight_args = _pack_params(layer_params, num_heads)
    n_layers = weight_args[0].shape[0]

    grid_spec = pltpu.PrefetchScalarGridSpec(
        num_scalar_prefetch=0,
        grid=(batch_blocks, n_layers),
        in_specs=[pl.BlockSpec((Bb, S, D), lambda b, l: (b, 0, 0))]
                 + [_layer_spec(a) for a in weight_args],
        out_specs=pl.BlockSpec((Bb, S, D), lambda b, l: (b, 0, 0)),
        scratch_shapes=[pltpu.VMEM((Bb * S, D), jnp.float32),   # activation carry
                        pltpu.VMEM((Bb * S, D), jnp.float32)],  # attention ctx
    )

    kernel = functools.partial(_encoder_kernel, num_heads=num_heads, seq_len=S)
    return pl.pallas_call(
        kernel,
        out_shape=jax.ShapeDtypeStruct((B, S, D), x.dtype),
        grid_spec=grid_spec,
        compiler_params=pltpu.CompilerParams(
            dimension_semantics=("parallel", "arbitrary")),
    )(x, *weight_args)


# ----------------------------------------------------------------------------
# Pure-JAX reference (mirrors the PyTorch forward, dropout = identity, f32)
# ----------------------------------------------------------------------------
def _reference_layer(x, p, num_heads, eps=1e-5):
    D = x.shape[-1]
    dk = D // num_heads

    def ln(v, g, b):
        m = jnp.mean(v, -1, keepdims=True)
        var = jnp.mean((v - m) ** 2, -1, keepdims=True)
        return (v - m) / jnp.sqrt(var + eps) * g + b

    q = x @ p["wq"] + p["bq"]
    k = x @ p["wk"] + p["bk"]
    v = x @ p["wv"] + p["bv"]
    B, S, _ = x.shape
    q = q.reshape(B, S, num_heads, dk).transpose(0, 2, 1, 3)
    k = k.reshape(B, S, num_heads, dk).transpose(0, 2, 1, 3)
    v = v.reshape(B, S, num_heads, dk).transpose(0, 2, 1, 3)
    s = jnp.einsum("bhqd,bhkd->bhqk", q, k) / math.sqrt(dk)
    a = jax.nn.softmax(s, axis=-1)
    o = jnp.einsum("bhqk,bhkd->bhqd", a, v).transpose(0, 2, 1, 3).reshape(B, S, D)
    o = o @ p["wo"] + p["bo"]
    x1 = ln(x + o, p["g1"], p["beta1"])
    ff = jnp.maximum(x1 @ p["w1"] + p["b1"], 0.0) @ p["w2"] + p["b2"]
    return ln(x1 + ff, p["g2"], p["beta2"])


def _reference(x, layer_params, num_heads):
    for p in layer_params:
        x = _reference_layer(x, p, num_heads)
    return x


# ----------------------------------------------------------------------------
# Deterministic parameter construction (weights stored as [in, out])
# ----------------------------------------------------------------------------
def make_params(key, n_layers, d_model, d_ff):
    layers = []
    s = 0.05
    for _ in range(n_layers):
        key, *ks = jax.random.split(key, 17)
        n = lambda k, shape: jax.random.normal(k, shape, jnp.float32)
        layers.append(dict(
            wq=n(ks[0], (d_model, d_model)) * s, bq=n(ks[1], (d_model,)) * s,
            wk=n(ks[2], (d_model, d_model)) * s, bk=n(ks[3], (d_model,)) * s,
            wv=n(ks[4], (d_model, d_model)) * s, bv=n(ks[5], (d_model,)) * s,
            wo=n(ks[6], (d_model, d_model)) * s, bo=n(ks[7], (d_model,)) * s,
            g1=1.0 + 0.1 * n(ks[8], (d_model,)), beta1=0.1 * n(ks[9], (d_model,)),
            w1=n(ks[10], (d_model, d_ff)) * s,   b1=n(ks[11], (d_ff,)) * s,
            w2=n(ks[12], (d_ff, d_model)) * s,   b2=n(ks[13], (d_model,)) * s,
            g2=1.0 + 0.1 * n(ks[14], (d_model,)), beta2=0.1 * n(ks[15], (d_model,)),
        ))
    return layers


if __name__ == "__main__":
    # Small shapes consistent with the module (d_model divisible by num_heads).
    B, S, D, H, DFF, N = 2, 8, 32, 4, 64, 2

    key = jax.random.PRNGKey(0)
    kx, kp = jax.random.split(key)
    x = jax.random.normal(kx, (B, S, D), jnp.float32)
    params = make_params(kp, N, D, DFF)

    out = jax.block_until_ready(encoder_forward(x, params, H))
    ref = _reference(x, params, H)

    assert out.shape == (B, S, D)
    max_err = float(jnp.max(jnp.abs(out - ref)))
    # bf16 matmul weights + approx-reciprocal softmax -> ~1e-3-level differences
    # vs the all-f32 reference.
    assert jnp.allclose(out, ref, atol=3e-2, rtol=3e-2), f"mismatch: {max_err}"
    print("KERNEL_OK")
</pallas_src>

<mosaic_0001>
module attributes {stable_mosaic.version = 11 : i64} {
  func.func @_encoder_kernel(%arg0: i32, %arg1: i32, %arg2: memref<2x8x32xf32, #tpu.memory_space<vmem>>, %arg3: memref<1x3x32x32xbf16, #tpu.memory_space<vmem>>, %arg4: memref<1x32x32xbf16, #tpu.memory_space<vmem>>, %arg5: memref<1x32x64xbf16, #tpu.memory_space<vmem>>, %arg6: memref<1x64x32xbf16, #tpu.memory_space<vmem>>, %arg7: memref<1x9x32xf32, #tpu.memory_space<vmem>>, %arg8: memref<1x1x64xf32, #tpu.memory_space<vmem>>, %arg9: memref<2x8x32xf32, #tpu.memory_space<vmem>>, %arg10: memref<16x32xf32, #tpu.memory_space<vmem>>, %arg11: memref<16x32xf32, #tpu.memory_space<vmem>>) attributes {dimension_semantics = [#tpu.dimension_semantics<parallel>, #tpu.dimension_semantics<arbitrary>], iteration_bounds = array<i64: 1, 2>, scalar_prefetch = 0 : i64, scratch_operands = 2 : i64, tpu.core_type = #tpu.core_type<tc>, window_params = [{transform_indices = @transform_0, window_bounds = array<i64: 2, 8, 32>}, {transform_indices = @transform_1, window_bounds = array<i64: 1, 3, 32, 32>}, {transform_indices = @transform_2, window_bounds = array<i64: 1, 32, 32>}, {transform_indices = @transform_3, window_bounds = array<i64: 1, 32, 64>}, {transform_indices = @transform_4, window_bounds = array<i64: 1, 64, 32>}, {transform_indices = @transform_5, window_bounds = array<i64: 1, 9, 32>}, {transform_indices = @transform_6, window_bounds = array<i64: 1, 1, 64>}, {transform_indices = @transform_7, window_bounds = array<i64: 2, 8, 32>}]} {
    %c0_i32 = arith.constant 0 : i32
    %0 = arith.cmpi eq, %arg1, %c0_i32 : i32
    %1 = arith.extui %0 : i1 to i32
    %c0_i32_0 = arith.constant 0 : i32
    %2 = arith.cmpi ne, %1, %c0_i32_0 : i32
    scf.if %2 {
      %c0_87 = arith.constant 0 : index
      %c0_88 = arith.constant 0 : index
      %c0_89 = arith.constant 0 : index
      %234 = vector.load %arg2[%c0_87, %c0_88, %c0_89] : memref<2x8x32xf32, #tpu.memory_space<vmem>>, vector<1x8x32xf32>
      %235 = vector.shape_cast %234 : vector<1x8x32xf32> to vector<8x32xf32>
      %c0_90 = arith.constant 0 : index
      %c0_91 = arith.constant 0 : index
      %236 = vector.load %arg10[%c0_90, %c0_91] : memref<16x32xf32, #tpu.memory_space<vmem>>, vector<8x32xf32>
      tpu.vector_store %arg10[%c0_90, %c0_91], %235 {strides = array<i32>} : memref<16x32xf32, #tpu.memory_space<vmem>>, vector<8x32xf32>,
      %c1 = arith.constant 1 : index
      %c0_92 = arith.constant 0 : index
      %c0_93 = arith.constant 0 : index
      %237 = vector.load %arg2[%c1, %c0_92, %c0_93] : memref<2x8x32xf32, #tpu.memory_space<vmem>>, vector<1x8x32xf32>
      %238 = vector.shape_cast %237 : vector<1x8x32xf32> to vector<8x32xf32>
      %c8_94 = arith.constant 8 : index
      %c0_95 = arith.constant 0 : index
      %239 = vector.load %arg10[%c8_94, %c0_95] : memref<16x32xf32, #tpu.memory_space<vmem>>, vector<8x32xf32>
      tpu.vector_store %arg10[%c8_94, %c0_95], %238 {strides = array<i32>} : memref<16x32xf32, #tpu.memory_space<vmem>>, vector<8x32xf32>,
    } else {
    }
    %c0 = arith.constant 0 : index
    %c0_1 = arith.constant 0 : index
    %3 = vector.load %arg10[%c0, %c0_1] : memref<16x32xf32, #tpu.memory_space<vmem>>, vector<16x32xf32>
    %4 = arith.truncf %3 : vector<16x32xf32> to vector<16x32xbf16>
    %c0_2 = arith.constant 0 : index
    %c0_3 = arith.constant 0 : index
    %c0_4 = arith.constant 0 : index
    %5 = vector.load %arg7[%c0_2, %c0_3, %c0_4] : memref<1x9x32xf32, #tpu.memory_space<vmem>>, vector<1x9x32xf32>
    %6 = vector.shape_cast %5 : vector<1x9x32xf32> to vector<9x32xf32>
    %c0_5 = arith.constant 0 : index
    %c0_6 = arith.constant 0 : index
    %c0_7 = arith.constant 0 : index
    %c0_8 = arith.constant 0 : index
    %7 = vector.load %arg3[%c0_5, %c0_6, %c0_7, %c0_8] : memref<1x3x32x32xbf16, #tpu.memory_space<vmem>>, vector<1x3x32x32xbf16>
    %8 = vector.shape_cast %7 : vector<1x3x32x32xbf16> to vector<3x32x32xbf16>
    %9 = vector.extract_strided_slice %8 {offsets = [0, 0, 0], sizes = [1, 32, 32], strides = [1, 1, 1]} : vector<3x32x32xbf16> to vector<1x32x32xbf16>
    %10 = vector.shape_cast %9 : vector<1x32x32xbf16> to vector<32x32xbf16>
    %cst = arith.constant dense<0.000000e+00> : vector<16x32xf32>
    %11 = tpu.matmul %4, %10, %cst {dimension_numbers = #tpu.dot_dimension_numbers<[1], [0], [0], [1], [0, 0, 1, 1], [], []>} : vector<16x32xbf16>, vector<32x32xbf16>, vector<16x32xf32> -> vector<16x32xf32>
    %12 = vector.extract_strided_slice %6 {offsets = [0, 0], sizes = [1, 32], strides = [1, 1]} : vector<9x32xf32> to vector<1x32xf32>
    %13 = vector.broadcast %12 : vector<1x32xf32> to vector<16x32xf32>
    %14 = arith.addf %11, %13 : vector<16x32xf32>
    %15 = vector.extract_strided_slice %8 {offsets = [1, 0, 0], sizes = [1, 32, 32], strides = [1, 1, 1]} : vector<3x32x32xbf16> to vector<1x32x32xbf16>
    %16 = vector.shape_cast %15 : vector<1x32x32xbf16> to vector<32x32xbf16>
    %cst_9 = arith.constant dense<0.000000e+00> : vector<16x32xf32>
    %17 = tpu.matmul %4, %16, %cst_9 {dimension_numbers = #tpu.dot_dimension_numbers<[1], [0], [0], [1], [0, 0, 1, 1], [], []>} : vector<16x32xbf16>, vector<32x32xbf16>, vector<16x32xf32> -> vector<16x32xf32>
    %18 = vector.extract_strided_slice %6 {offsets = [1, 0], sizes = [1, 32], strides = [1, 1]} : vector<9x32xf32> to vector<1x32xf32>
    %19 = vector.broadcast %18 : vector<1x32xf32> to vector<16x32xf32>
    %20 = arith.addf %17, %19 : vector<16x32xf32>
    %21 = vector.extract_strided_slice %8 {offsets = [2, 0, 0], sizes = [1, 32, 32], strides = [1, 1, 1]} : vector<3x32x32xbf16> to vector<1x32x32xbf16>
    %22 = vector.shape_cast %21 : vector<1x32x32xbf16> to vector<32x32xbf16>
    %cst_10 = arith.constant dense<0.000000e+00> : vector<16x32xf32>
    %23 = tpu.matmul %4, %22, %cst_10 {dimension_numbers = #tpu.dot_dimension_numbers<[1], [0], [0], [1], [0, 0, 1, 1], [], []>} : vector<16x32xbf16>, vector<32x32xbf16>, vector<16x32xf32> -> vector<16x32xf32>
    %24 = vector.extract_strided_slice %6 {offsets = [2, 0], sizes = [1, 32], strides = [1, 1]} : vector<9x32xf32> to vector<1x32xf32>
    %25 = vector.broadcast %24 : vector<1x32xf32> to vector<16x32xf32>
    %26 = arith.addf %23, %25 : vector<16x32xf32>
    %27 = vector.extract_strided_slice %14 {offsets = [0, 0], sizes = [8, 8], strides = [1, 1]} : vector<16x32xf32> to vector<8x8xf32>
    %28 = vector.extract_strided_slice %20 {offsets = [0, 0], sizes = [8, 8], strides = [1, 1]} : vector<16x32xf32> to vector<8x8xf32>
    %29 = vector.extract_strided_slice %26 {offsets = [0, 0], sizes = [8, 8], strides = [1, 1]} : vector<16x32xf32> to vector<8x8xf32>
    %cst_11 = arith.constant dense<0.000000e+00> : vector<8x8xf32>
    %30 = tpu.matmul %27, %28, %cst_11 {dimension_numbers = #tpu.dot_dimension_numbers<[1], [1], [0], [0], [0, 0, 1, 0], [], []>} : vector<8x8xf32>, vector<8x8xf32>, vector<8x8xf32> -> vector<8x8xf32>
    %cst_12 = arith.constant dense<0xFF800000> : vector<8xf32>
    %31 = vector.multi_reduction <maximumf>, %30, %cst_12 [1] : vector<8x8xf32> to vector<8xf32>
    %32 = vector.shape_cast %31 : vector<8xf32> to vector<8x1xf32>
    %33 = vector.broadcast %32 : vector<8x1xf32> to vector<8x8xf32>
    %34 = arith.subf %30, %33 : vector<8x8xf32>
    %35 = math.exp %34 : vector<8x8xf32>
    %cst_13 = arith.constant dense<0.000000e+00> : vector<8xf32>
    %36 = vector.multi_reduction <add>, %35, %cst_13 [1] : vector<8x8xf32> to vector<8xf32>
    %37 = vector.shape_cast %36 : vector<8xf32> to vector<8x1xf32>
    %38 = tpu.reciprocal %37 {approx = true} : vector<8x1xf32> -> vector<8x1xf32>
    %39 = vector.broadcast %38 : vector<8x1xf32> to vector<8x8xf32>
    %40 = arith.mulf %35, %39 : vector<8x8xf32>
    %cst_14 = arith.constant dense<0.000000e+00> : vector<8x8xf32>
    %41 = tpu.matmul %40, %29, %cst_14 {dimension_numbers = #tpu.dot_dimension_numbers<[1], [0], [0], [1], [0, 0, 1, 1], [], []>} : vector<8x8xf32>, vector<8x8xf32>, vector<8x8xf32> -> vector<8x8xf32>
    %c0_15 = arith.constant 0 : index
    %c0_16 = arith.constant 0 : index
    %42 = vector.load %arg11[%c0_15, %c0_16] : memref<16x32xf32, #tpu.memory_space<vmem>>, vector<8x8xf32>
    tpu.vector_store %arg11[%c0_15, %c0_16], %41 {strides = array<i32>} : memref<16x32xf32, #tpu.memory_space<vmem>>, vector<8x8xf32>,
    %43 = vector.extract_strided_slice %14 {offsets = [0, 8], sizes = [8, 8], strides = [1, 1]} : vector<16x32xf32> to vector<8x8xf32>
    %44 = vector.extract_strided_slice %20 {offsets = [0, 8], sizes = [8, 8], strides = [1, 1]} : vector<16x32xf32> to vector<8x8xf32>
    %45 = vector.extract_strided_slice %26 {offsets = [0, 8], sizes = [8, 8], strides = [1, 1]} : vector<16x32xf32> to vector<8x8xf32>
    %cst_17 = arith.constant dense<0.000000e+00> : vector<8x8xf32>
    %46 = tpu.matmul %43, %44, %cst_17 {dimension_numbers = #tpu.dot_dimension_numbers<[1], [1], [0], [0], [0, 0, 1, 0], [], []>} : vector<8x8xf32>, vector<8x8xf32>, vector<8x8xf32> -> vector<8x8xf32>
    %cst_18 = arith.constant dense<0xFF800000> : vector<8xf32>
    %47 = vector.multi_reduction <maximumf>, %46, %cst_18 [1] : vector<8x8xf32> to vector<8xf32>
    %48 = vector.shape_cast %47 : vector<8xf32> to vector<8x1xf32>
    %49 = vector.broadcast %48 : vector<8x1xf32> to vector<8x8xf32>
    %50 = arith.subf %46, %49 : vector<8x8xf32>
    %51 = math.exp %50 : vector<8x8xf32>
    %cst_19 = arith.constant dense<0.000000e+00> : vector<8xf32>
    %52 = vector.multi_reduction <add>, %51, %cst_19 [1] : vector<8x8xf32> to vector<8xf32>
    %53 = vector.shape_cast %52 : vector<8xf32> to vector<8x1xf32>
    %54 = tpu.reciprocal %53 {approx = true} : vector<8x1xf32> -> vector<8x1xf32>
    %55 = vector.broadcast %54 : vector<8x1xf32> to vector<8x8xf32>
    %56 = arith.mulf %51, %55 : vector<8x8xf32>
    %cst_20 = arith.constant dense<0.000000e+00> : vector<8x8xf32>
    %57 = tpu.matmul %56, %45, %cst_20 {dimension_numbers = #tpu.dot_dimension_numbers<[1], [0], [0], [1], [0, 0, 1, 1], [], []>} : vector<8x8xf32>, vector<8x8xf32>, vector<8x8xf32> -> vector<8x8xf32>
    %c0_21 = arith.constant 0 : index
    %c8 = arith.constant 8 : index
    %58 = vector.load %arg11[%c0_21, %c8] : memref<16x32xf32, #tpu.memory_space<vmem>>, vector<8x8xf32>
    tpu.vector_store %arg11[%c0_21, %c8], %57 {strides = array<i32>} : memref<16x32xf32, #tpu.memory_space<vmem>>, vector<8x8xf32>,
    %59 = vector.extract_strided_slice %14 {offsets = [0, 16], sizes = [8, 8], strides = [1, 1]} : vector<16x32xf32> to vector<8x8xf32>
    %60 = vector.extract_strided_slice %20 {offsets = [0, 16], sizes = [8, 8], strides = [1, 1]} : vector<16x32xf32> to vector<8x8xf32>
    %61 = vector.extract_strided_slice %26 {offsets = [0, 16], sizes = [8, 8], strides = [1, 1]} : vector<16x32xf32> to vector<8x8xf32>
    %cst_22 = arith.constant dense<0.000000e+00> : vector<8x8xf32>
    %62 = tpu.matmul %59, %60, %cst_22 {dimension_numbers = #tpu.dot_dimension_numbers<[1], [1], [0], [0], [0, 0, 1, 0], [], []>} : vector<8x8xf32>, vector<8x8xf32>, vector<8x8xf32> -> vector<8x8xf32>
    %cst_23 = arith.constant dense<0xFF800000> : vector<8xf32>
    %63 = vector.multi_reduction <maximumf>, %62, %cst_23 [1] : vector<8x8xf32> to vector<8xf32>
    %64 = vector.shape_cast %63 : vector<8xf32> to vector<8x1xf32>
    %65 = vector.broadcast %64 : vector<8x1xf32> to vector<8x8xf32>
    %66 = arith.subf %62, %65 : vector<8x8xf32>
    %67 = math.exp %66 : vector<8x8xf32>
    %cst_24 = arith.constant dense<0.000000e+00> : vector<8xf32>
    %68 = vector.multi_reduction <add>, %67, %cst_24 [1] : vector<8x8xf32> to vector<8xf32>
    %69 = vector.shape_cast %68 : vector<8xf32> to vector<8x1xf32>
    %70 = tpu.reciprocal %69 {approx = true} : vector<8x1xf32> -> vector<8x1xf32>
    %71 = vector.broadcast %70 : vector<8x1xf32> to vector<8x8xf32>
    %72 = arith.mulf %67, %71 : vector<8x8xf32>
    %cst_25 = arith.constant dense<0.000000e+00> : vector<8x8xf32>
    %73 = tpu.matmul %72, %61, %cst_25 {dimension_numbers = #tpu.dot_dimension_numbers<[1], [0], [0], [1], [0, 0, 1, 1], [], []>} : vector<8x8xf32>, vector<8x8xf32>, vector<8x8xf32> -> vector<8x8xf32>
    %c0_26 = arith.constant 0 : index
    %c16 = arith.constant 16 : index
    %74 = vector.load %arg11[%c0_26, %c16] : memref<16x32xf32, #tpu.memory_space<vmem>>, vector<8x8xf32>
    tpu.vector_store %arg11[%c0_26, %c16], %73 {strides = array<i32>} : memref<16x32xf32, #tpu.memory_space<vmem>>, vector<8x8xf32>,
    %75 = vector.extract_strided_slice %14 {offsets = [0, 24], sizes = [8, 8], strides = [1, 1]} : vector<16x32xf32> to vector<8x8xf32>
    %76 = vector.extract_strided_slice %20 {offsets = [0, 24], sizes = [8, 8], strides = [1, 1]} : vector<16x32xf32> to vector<8x8xf32>
    %77 = vector.extract_strided_slice %26 {offsets = [0, 24], sizes = [8, 8], strides = [1, 1]} : vector<16x32xf32> to vector<8x8xf32>
    %cst_27 = arith.constant dense<0.000000e+00> : vector<8x8xf32>
    %78 = tpu.matmul %75, %76, %cst_27 {dimension_numbers = #tpu.dot_dimension_numbers<[1], [1], [0], [0], [0, 0, 1, 0], [], []>} : vector<8x8xf32>, vector<8x8xf32>, vector<8x8xf32> -> vector<8x8xf32>
    %cst_28 = arith.constant dense<0xFF800000> : vector<8xf32>
    %79 = vector.multi_reduction <maximumf>, %78, %cst_28 [1] : vector<8x8xf32> to vector<8xf32>
    %80 = vector.shape_cast %79 : vector<8xf32> to vector<8x1xf32>
    %81 = vector.broadcast %80 : vector<8x1xf32> to vector<8x8xf32>
    %82 = arith.subf %78, %81 : vector<8x8xf32>
    %83 = math.exp %82 : vector<8x8xf32>
    %cst_29 = arith.constant dense<0.000000e+00> : vector<8xf32>
    %84 = vector.multi_reduction <add>, %83, %cst_29 [1] : vector<8x8xf32> to vector<8xf32>
    %85 = vector.shape_cast %84 : vector<8xf32> to vector<8x1xf32>
    %86 = tpu.reciprocal %85 {approx = true} : vector<8x1xf32> -> vector<8x1xf32>
    %87 = vector.broadcast %86 : vector<8x1xf32> to vector<8x8xf32>
    %88 = arith.mulf %83, %87 : vector<8x8xf32>
    %cst_30 = arith.constant dense<0.000000e+00> : vector<8x8xf32>
    %89 = tpu.matmul %88, %77, %cst_30 {dimension_numbers = #tpu.dot_dimension_numbers<[1], [0], [0], [1], [0, 0, 1, 1], [], []>} : vector<8x8xf32>, vector<8x8xf32>, vector<8x8xf32> -> vector<8x8xf32>
    %c0_31 = arith.constant 0 : index
    %c24 = arith.constant 24 : index
    %90 = vector.load %arg11[%c0_31, %c24] : memref<16x32xf32, #tpu.memory_space<vmem>>, vector<8x8xf32>
    tpu.vector_store %arg11[%c0_31, %c24], %89 {strides = array<i32>} : memref<16x32xf32, #tpu.memory_space<vmem>>, vector<8x8xf32>,
    %91 = vector.extract_strided_slice %14 {offsets = [8, 0], sizes = [8, 8], strides = [1, 1]} : vector<16x32xf32> to vector<8x8xf32>
    %92 = vector.extract_strided_slice %20 {offsets = [8, 0], sizes = [8, 8], strides = [1, 1]} : vector<16x32xf32> to vector<8x8xf32>
    %93 = vector.extract_strided_slice %26 {offsets = [8, 0], sizes = [8, 8], strides = [1, 1]} : vector<16x32xf32> to vector<8x8xf32>
    %cst_32 = arith.constant dense<0.000000e+00> : vector<8x8xf32>
    %94 = tpu.matmul %91, %92, %cst_32 {dimension_numbers = #tpu.dot_dimension_numbers<[1], [1], [0], [0], [0, 0, 1, 0], [], []>} : vector<8x8xf32>, vector<8x8xf32>, vector<8x8xf32> -> vector<8x8xf32>
    %cst_33 = arith.constant dense<0xFF800000> : vector<8xf32>
    %95 = vector.multi_reduction <maximumf>, %94, %cst_33 [1] : vector<8x8xf32> to vector<8xf32>
    %96 = vector.shape_cast %95 : vector<8xf32> to vector<8x1xf32>
    %97 = vector.broadcast %96 : vector<8x1xf32> to vector<8x8xf32>
    %98 = arith.subf %94, %97 : vector<8x8xf32>
    %99 = math.exp %98 : vector<8x8xf32>
    %cst_34 = arith.constant dense<0.000000e+00> : vector<8xf32>
    %100 = vector.multi_reduction <add>, %99, %cst_34 [1] : vector<8x8xf32> to vector<8xf32>
    %101 = vector.shape_cast %100 : vector<8xf32> to vector<8x1xf32>
    %102 = tpu.reciprocal %101 {approx = true} : vector<8x1xf32> -> vector<8x1xf32>
    %103 = vector.broadcast %102 : vector<8x1xf32> to vector<8x8xf32>
    %104 = arith.mulf %99, %103 : vector<8x8xf32>
    %cst_35 = arith.constant dense<0.000000e+00> : vector<8x8xf32>
    %105 = tpu.matmul %104, %93, %cst_35 {dimension_numbers = #tpu.dot_dimension_numbers<[1], [0], [0], [1], [0, 0, 1, 1], [], []>} : vector<8x8xf32>, vector<8x8xf32>, vector<8x8xf32> -> vector<8x8xf32>
    %c8_36 = arith.constant 8 : index
    %c0_37 = arith.constant 0 : index
    %106 = vector.load %arg11[%c8_36, %c0_37] : memref<16x32xf32, #tpu.memory_space<vmem>>, vector<8x8xf32>
    tpu.vector_store %arg11[%c8_36, %c0_37], %105 {strides = array<i32>} : memref<16x32xf32, #tpu.memory_space<vmem>>, vector<8x8xf32>,
    %107 = vector.extract_strided_slice %14 {offsets = [8, 8], sizes = [8, 8], strides = [1, 1]} : vector<16x32xf32> to vector<8x8xf32>
    %108 = vector.extract_strided_slice %20 {offsets = [8, 8], sizes = [8, 8], strides = [1, 1]} : vector<16x32xf32> to vector<8x8xf32>
    %109 = vector.extract_strided_slice %26 {offsets = [8, 8], sizes = [8, 8], strides = [1, 1]} : vector<16x32xf32> to vector<8x8xf32>
    %cst_38 = arith.constant dense<0.000000e+00> : vector<8x8xf32>
    %110 = tpu.matmul %107, %108, %cst_38 {dimension_numbers = #tpu.dot_dimension_numbers<[1], [1], [0], [0], [0, 0, 1, 0], [], []>} : vector<8x8xf32>, vector<8x8xf32>, vector<8x8xf32> -> vector<8x8xf32>
    %cst_39 = arith.constant dense<0xFF800000> : vector<8xf32>
    %111 = vector.multi_reduction <maximumf>, %110, %cst_39 [1] : vector<8x8xf32> to vector<8xf32>
    %112 = vector.shape_cast %111 : vector<8xf32> to vector<8x1xf32>
    %113 = vector.broadcast %112 : vector<8x1xf32> to vector<8x8xf32>
    %114 = arith.subf %110, %113 : vector<8x8xf32>
    %115 = math.exp %114 : vector<8x8xf32>
    %cst_40 = arith.constant dense<0.000000e+00> : vector<8xf32>
    %116 = vector.multi_reduction <add>, %115, %cst_40 [1] : vector<8x8xf32> to vector<8xf32>
    %117 = vector.shape_cast %116 : vector<8xf32> to vector<8x1xf32>
    %118 = tpu.reciprocal %117 {approx = true} : vector<8x1xf32> -> vector<8x1xf32>
    %119 = vector.broadcast %118 : vector<8x1xf32> to vector<8x8xf32>
    %120 = arith.mulf %115, %119 : vector<8x8xf32>
    %cst_41 = arith.constant dense<0.000000e+00> : vector<8x8xf32>
    %121 = tpu.matmul %120, %109, %cst_41 {dimension_numbers = #tpu.dot_dimension_numbers<[1], [0], [0], [1], [0, 0, 1, 1], [], []>} : vector<8x8xf32>, vector<8x8xf32>, vector<8x8xf32> -> vector<8x8xf32>
    %c8_42 = arith.constant 8 : index
    %c8_43 = arith.constant 8 : index
    %122 = vector.load %arg11[%c8_42, %c8_43] : memref<16x32xf32, #tpu.memory_space<vmem>>, vector<8x8xf32>
    tpu.vector_store %arg11[%c8_42, %c8_43], %121 {strides = array<i32>} : memref<16x32xf32, #tpu.memory_space<vmem>>, vector<8x8xf32>,
    %123 = vector.extract_strided_slice %14 {offsets = [8, 16], sizes = [8, 8], strides = [1, 1]} : vector<16x32xf32> to vector<8x8xf32>
    %124 = vector.extract_strided_slice %20 {offsets = [8, 16], sizes = [8, 8], strides = [1, 1]} : vector<16x32xf32> to vector<8x8xf32>
    %125 = vector.extract_strided_slice %26 {offsets = [8, 16], sizes = [8, 8], strides = [1, 1]} : vector<16x32xf32> to vector<8x8xf32>
    %cst_44 = arith.constant dense<0.000000e+00> : vector<8x8xf32>
    %126 = tpu.matmul %123, %124, %cst_44 {dimension_numbers = #tpu.dot_dimension_numbers<[1], [1], [0], [0], [0, 0, 1, 0], [], []>} : vector<8x8xf32>, vector<8x8xf32>, vector<8x8xf32> -> vector<8x8xf32>
    %cst_45 = arith.constant dense<0xFF800000> : vector<8xf32>
    %127 = vector.multi_reduction <maximumf>, %126, %cst_45 [1] : vector<8x8xf32> to vector<8xf32>
    %128 = vector.shape_cast %127 : vector<8xf32> to vector<8x1xf32>
    %129 = vector.broadcast %128 : vector<8x1xf32> to vector<8x8xf32>
    %130 = arith.subf %126, %129 : vector<8x8xf32>
    %131 = math.exp %130 : vector<8x8xf32>
    %cst_46 = arith.constant dense<0.000000e+00> : vector<8xf32>
    %132 = vector.multi_reduction <add>, %131, %cst_46 [1] : vector<8x8xf32> to vector<8xf32>
    %133 = vector.shape_cast %132 : vector<8xf32> to vector<8x1xf32>
    %134 = tpu.reciprocal %133 {approx = true} : vector<8x1xf32> -> vector<8x1xf32>
    %135 = vector.broadcast %134 : vector<8x1xf32> to vector<8x8xf32>
    %136 = arith.mulf %131, %135 : vector<8x8xf32>
    %cst_47 = arith.constant dense<0.000000e+00> : vector<8x8xf32>
    %137 = tpu.matmul %136, %125, %cst_47 {dimension_numbers = #tpu.dot_dimension_numbers<[1], [0], [0], [1], [0, 0, 1, 1], [], []>} : vector<8x8xf32>, vector<8x8xf32>, vector<8x8xf32> -> vector<8x8xf32>
    %c8_48 = arith.constant 8 : index
    %c16_49 = arith.constant 16 : index
    %138 = vector.load %arg11[%c8_48, %c16_49] : memref<16x32xf32, #tpu.memory_space<vmem>>, vector<8x8xf32>
    tpu.vector_store %arg11[%c8_48, %c16_49], %137 {strides = array<i32>} : memref<16x32xf32, #tpu.memory_space<vmem>>, vector<8x8xf32>,
    %139 = vector.extract_strided_slice %14 {offsets = [8, 24], sizes = [8, 8], strides = [1, 1]} : vector<16x32xf32> to vector<8x8xf32>
    %140 = vector.extract_strided_slice %20 {offsets = [8, 24], sizes = [8, 8], strides = [1, 1]} : vector<16x32xf32> to vector<8x8xf32>
    %141 = vector.extract_strided_slice %26 {offsets = [8, 24], sizes = [8, 8], strides = [1, 1]} : vector<16x32xf32> to vector<8x8xf32>
    %cst_50 = arith.constant dense<0.000000e+00> : vector<8x8xf32>
    %142 = tpu.matmul %139, %140, %cst_50 {dimension_numbers = #tpu.dot_dimension_numbers<[1], [1], [0], [0], [0, 0, 1, 0], [], []>} : vector<8x8xf32>, vector<8x8xf32>, vector<8x8xf32> -> vector<8x8xf32>
    %cst_51 = arith.constant dense<0xFF800000> : vector<8xf32>
    %143 = vector.multi_reduction <maximumf>, %142, %cst_51 [1] : vector<8x8xf32> to vector<8xf32>
    %144 = vector.shape_cast %143 : vector<8xf32> to vector<8x1xf32>
    %145 = vector.broadcast %144 : vector<8x1xf32> to vector<8x8xf32>
    %146 = arith.subf %142, %145 : vector<8x8xf32>
    %147 = math.exp %146 : vector<8x8xf32>
    %cst_52 = arith.constant dense<0.000000e+00> : vector<8xf32>
    %148 = vector.multi_reduction <add>, %147, %cst_52 [1] : vector<8x8xf32> to vector<8xf32>
    %149 = vector.shape_cast %148 : vector<8xf32> to vector<8x1xf32>
    %150 = tpu.reciprocal %149 {approx = true} : vector<8x1xf32> -> vector<8x1xf32>
    %151 = vector.broadcast %150 : vector<8x1xf32> to vector<8x8xf32>
    %152 = arith.mulf %147, %151 : vector<8x8xf32>
    %cst_53 = arith.constant dense<0.000000e+00> : vector<8x8xf32>
    %153 = tpu.matmul %152, %141, %cst_53 {dimension_numbers = #tpu.dot_dimension_numbers<[1], [0], [0], [1], [0, 0, 1, 1], [], []>} : vector<8x8xf32>, vector<8x8xf32>, vector<8x8xf32> -> vector<8x8xf32>
    %c8_54 = arith.constant 8 : index
    %c24_55 = arith.constant 24 : index
    %154 = vector.load %arg11[%c8_54, %c24_55] : memref<16x32xf32, #tpu.memory_space<vmem>>, vector<8x8xf32>
    tpu.vector_store %arg11[%c8_54, %c24_55], %153 {strides = array<i32>} : memref<16x32xf32, #tpu.memory_space<vmem>>, vector<8x8xf32>,
    %c0_56 = arith.constant 0 : index
    %c0_57 = arith.constant 0 : index
    %155 = vector.load %arg11[%c0_56, %c0_57] : memref<16x32xf32, #tpu.memory_space<vmem>>, vector<16x32xf32>
    %156 = arith.truncf %155 : vector<16x32xf32> to vector<16x32xbf16>
    %c0_58 = arith.constant 0 : index
    %c0_59 = arith.constant 0 : index
    %c0_60 = arith.constant 0 : index
    %157 = vector.load %arg4[%c0_58, %c0_59, %c0_60] : memref<1x32x32xbf16, #tpu.memory_space<vmem>>, vector<1x32x32xbf16>
    %158 = vector.shape_cast %157 : vector<1x32x32xbf16> to vector<32x32xbf16>
    %cst_61 = arith.constant dense<0.000000e+00> : vector<16x32xf32>
    %159 = tpu.matmul %156, %158, %cst_61 {dimension_numbers = #tpu.dot_dimension_numbers<[1], [0], [0], [1], [0, 0, 1, 1], [], []>} : vector<16x32xbf16>, vector<32x32xbf16>, vector<16x32xf32> -> vector<16x32xf32>
    %160 = vector.extract_strided_slice %6 {offsets = [3, 0], sizes = [1, 32], strides = [1, 1]} : vector<9x32xf32> to vector<1x32xf32>
    %161 = vector.broadcast %160 : vector<1x32xf32> to vector<16x32xf32>
    %162 = arith.addf %159, %161 : vector<16x32xf32>
    %163 = arith.addf %3, %162 : vector<16x32xf32>
    %164 = vector.extract_strided_slice %6 {offsets = [4, 0], sizes = [1, 32], strides = [1, 1]} : vector<9x32xf32> to vector<1x32xf32>
    %165 = vector.extract_strided_slice %6 {offsets = [5, 0], sizes = [1, 32], strides = [1, 1]} : vector<9x32xf32> to vector<1x32xf32>
    %cst_62 = arith.constant dense<0.000000e+00> : vector<16xf32>
    %166 = vector.multi_reduction <add>, %163, %cst_62 [1] : vector<16x32xf32> to vector<16xf32>
    %167 = vector.shape_cast %166 : vector<16xf32> to vector<16x1xf32>
    %cst_63 = arith.constant 3.200000e+01 : f32
    %168 = vector.broadcast %cst_63 : f32 to vector<16x1xf32>
    %169 = arith.divf %167, %168 : vector<16x1xf32>
    %170 = arith.mulf %163, %163 : vector<16x32xf32>
    %cst_64 = arith.constant dense<0.000000e+00> : vector<16xf32>
    %171 = vector.multi_reduction <add>, %170, %cst_64 [1] : vector<16x32xf32> to vector<16xf32>
    %172 = vector.shape_cast %171 : vector<16xf32> to vector<16x1xf32>
    %cst_65 = arith.constant 3.200000e+01 : f32
    %173 = vector.broadcast %cst_65 : f32 to vector<16x1xf32>
    %174 = arith.divf %172, %173 : vector<16x1xf32>
    %175 = arith.mulf %169, %169 : vector<16x1xf32>
    %176 = arith.subf %174, %175 : vector<16x1xf32>
    %177 = vector.broadcast %169 : vector<16x1xf32> to vector<16x32xf32>
    %178 = arith.subf %163, %177 : vector<16x32xf32>
    %cst_66 = arith.constant 9.99999974E-6 : f32
    %179 = vector.broadcast %cst_66 : f32 to vector<16x1xf32>
    %180 = arith.addf %176, %179 : vector<16x1xf32>
    %181 = math.rsqrt %180 : vector<16x1xf32>
    %182 = vector.broadcast %181 : vector<16x1xf32> to vector<16x32xf32>
    %183 = arith.mulf %178, %182 : vector<16x32xf32>
    %184 = vector.broadcast %164 : vector<1x32xf32> to vector<16x32xf32>
    %185 = arith.mulf %183, %184 : vector<16x32xf32>
    %186 = vector.broadcast %165 : vector<1x32xf32> to vector<16x32xf32>
    %187 = arith.addf %185, %186 : vector<16x32xf32>
    %188 = arith.truncf %187 : vector<16x32xf32> to vector<16x32xbf16>
    %c0_67 = arith.constant 0 : index
    %c0_68 = arith.constant 0 : index
    %c0_69 = arith.constant 0 : index
    %189 = vector.load %arg5[%c0_67, %c0_68, %c0_69] : memref<1x32x64xbf16, #tpu.memory_space<vmem>>, vector<1x32x64xbf16>
    %190 = vector.shape_cast %189 : vector<1x32x64xbf16> to vector<32x64xbf16>
    %cst_70 = arith.constant dense<0.000000e+00> : vector<16x64xf32>
    %191 = tpu.matmul %188, %190, %cst_70 {dimension_numbers = #tpu.dot_dimension_numbers<[1], [0], [0], [1], [0, 0, 1, 1], [], []>} : vector<16x32xbf16>, vector<32x64xbf16>, vector<16x64xf32> -> vector<16x64xf32>
    %c0_71 = arith.constant 0 : index
    %c0_72 = arith.constant 0 : index
    %c0_73 = arith.constant 0 : index
    %192 = vector.load %arg8[%c0_71, %c0_72, %c0_73] : memref<1x1x64xf32, #tpu.memory_space<vmem>>, vector<1x1x64xf32>
    %193 = vector.shape_cast %192 : vector<1x1x64xf32> to vector<1x64xf32>
    %194 = vector.broadcast %193 : vector<1x64xf32> to vector<16x64xf32>
    %195 = arith.addf %191, %194 : vector<16x64xf32>
    %cst_74 = arith.constant 0.000000e+00 : f32
    %196 = vector.broadcast %cst_74 : f32 to vector<16x64xf32>
    %197 = arith.maximumf %195, %196 : vector<16x64xf32>
    %198 = arith.truncf %197 : vector<16x64xf32> to vector<16x64xbf16>
    %c0_75 = arith.constant 0 : index
    %c0_76 = arith.constant 0 : index
    %c0_77 = arith.constant 0 : index
    %199 = vector.load %arg6[%c0_75, %c0_76, %c0_77] : memref<1x64x32xbf16, #tpu.memory_space<vmem>>, vector<1x64x32xbf16>
    %200 = vector.shape_cast %199 : vector<1x64x32xbf16> to vector<64x32xbf16>
    %cst_78 = arith.constant dense<0.000000e+00> : vector<16x32xf32>
    %201 = tpu.matmul %198, %200, %cst_78 {dimension_numbers = #tpu.dot_dimension_numbers<[1], [0], [0], [1], [0, 0, 1, 1], [], []>} : vector<16x64xbf16>, vector<64x32xbf16>, vector<16x32xf32> -> vector<16x32xf32>
    %202 = vector.extract_strided_slice %6 {offsets = [6, 0], sizes = [1, 32], strides = [1, 1]} : vector<9x32xf32> to vector<1x32xf32>
    %203 = vector.broadcast %202 : vector<1x32xf32> to vector<16x32xf32>
    %204 = arith.addf %201, %203 : vector<16x32xf32>
    %205 = arith.addf %187, %204 : vector<16x32xf32>
    %206 = vector.extract_strided_slice %6 {offsets = [7, 0], sizes = [1, 32], strides = [1, 1]} : vector<9x32xf32> to vector<1x32xf32>
    %207 = vector.extract_strided_slice %6 {offsets = [8, 0], sizes = [1, 32], strides = [1, 1]} : vector<9x32xf32> to vector<1x32xf32>
    %cst_79 = arith.constant dense<0.000000e+00> : vector<16xf32>
    %208 = vector.multi_reduction <add>, %205, %cst_79 [1] : vector<16x32xf32> to vector<16xf32>
    %209 = vector.shape_cast %208 : vector<16xf32> to vector<16x1xf32>
    %cst_80 = arith.constant 3.200000e+01 : f32
    %210 = vector.broadcast %cst_80 : f32 to vector<16x1xf32>
    %211 = arith.divf %209, %210 : vector<16x1xf32>
    %212 = arith.mulf %205, %205 : vector<16x32xf32>
    %cst_81 = arith.constant dense<0.000000e+00> : vector<16xf32>
    %213 = vector.multi_reduction <add>, %212, %cst_81 [1] : vector<16x32xf32> to vector<16xf32>
    %214 = vector.shape_cast %213 : vector<16xf32> to vector<16x1xf32>
    %cst_82 = arith.constant 3.200000e+01 : f32
    %215 = vector.broadcast %cst_82 : f32 to vector<16x1xf32>
    %216 = arith.divf %214, %215 : vector<16x1xf32>
    %217 = arith.mulf %211, %211 : vector<16x1xf32>
    %218 = arith.subf %216, %217 : vector<16x1xf32>
    %219 = vector.broadcast %211 : vector<16x1xf32> to vector<16x32xf32>
    %220 = arith.subf %205, %219 : vector<16x32xf32>
    %cst_83 = arith.constant 9.99999974E-6 : f32
    %221 = vector.broadcast %cst_83 : f32 to vector<16x1xf32>
    %222 = arith.addf %218, %221 : vector<16x1xf32>
    %223 = math.rsqrt %222 : vector<16x1xf32>
    %224 = vector.broadcast %223 : vector<16x1xf32> to vector<16x32xf32>
    %225 = arith.mulf %220, %224 : vector<16x32xf32>
    %226 = vector.broadcast %206 : vector<1x32xf32> to vector<16x32xf32>
    %227 = arith.mulf %225, %226 : vector<16x32xf32>
    %228 = vector.broadcast %207 : vector<1x32xf32> to vector<16x32xf32>
    %229 = arith.addf %227, %228 : vector<16x32xf32>
    %c0_84 = arith.constant 0 : index
    %c0_85 = arith.constant 0 : index
    %230 = vector.load %arg10[%c0_84, %c0_85] : memref<16x32xf32, #tpu.memory_space<vmem>>, vector<16x32xf32>
    tpu.vector_store %arg10[%c0_84, %c0_85], %229 {strides = array<i32>} : memref<16x32xf32, #tpu.memory_space<vmem>>, vector<16x32xf32>,
    %c1_i32 = arith.constant 1 : i32
    %231 = arith.cmpi eq, %arg1, %c1_i32 : i32
    %232 = arith.extui %231 : i1 to i32
    %c0_i32_86 = arith.constant 0 : i32
    %233 = arith.cmpi ne, %232, %c0_i32_86 : i32
    scf.if %233 {
      %234 = vector.extract_strided_slice %229 {offsets = [0, 0], sizes = [8, 32], strides = [1, 1]} : vector<16x32xf32> to vector<8x32xf32>
      %c0_87 = arith.constant 0 : index
      %c0_88 = arith.constant 0 : index
      %c0_89 = arith.constant 0 : index
      %235 = vector.load %arg9[%c0_87, %c0_88, %c0_89] : memref<2x8x32xf32, #tpu.memory_space<vmem>>, vector<1x8x32xf32>
      %236 = vector.shape_cast %235 : vector<1x8x32xf32> to vector<8x32xf32>
      %237 = vector.shape_cast %234 : vector<8x32xf32> to vector<1x8x32xf32>
      tpu.vector_store %arg9[%c0_87, %c0_88, %c0_89], %237 {strides = array<i32>} : memref<2x8x32xf32, #tpu.memory_space<vmem>>, vector<1x8x32xf32>,
      %238 = vector.extract_strided_slice %229 {offsets = [8, 0], sizes = [8, 32], strides = [1, 1]} : vector<16x32xf32> to vector<8x32xf32>
      %c1 = arith.constant 1 : index
      %c0_90 = arith.constant 0 : index
      %c0_91 = arith.constant 0 : index
      %239 = vector.load %arg9[%c1, %c0_90, %c0_91] : memref<2x8x32xf32, #tpu.memory_space<vmem>>, vector<1x8x32xf32>
      %240 = vector.shape_cast %239 : vector<1x8x32xf32> to vector<8x32xf32>
      %241 = vector.shape_cast %238 : vector<8x32xf32> to vector<1x8x32xf32>
      tpu.vector_store %arg9[%c1, %c0_90, %c0_91], %241 {strides = array<i32>} : memref<2x8x32xf32, #tpu.memory_space<vmem>>, vector<1x8x32xf32>,
    } else {
    }
    return
  }
  func.func @transform_0(%arg0: i32, %arg1: i32) -> (i32, i32, i32) {
    %c0_i32 = arith.constant 0 : i32
    %c0_i32_0 = arith.constant 0 : i32
    %c0_i32_1 = arith.constant 0 : i32
    return %arg0, %c0_i32, %c0_i32_0 : i32, i32, i32
  }
  func.func @transform_1(%arg0: i32, %arg1: i32) -> (i32, i32, i32, i32) {
    %c0_i32 = arith.constant 0 : i32
    %c0_i32_0 = arith.constant 0 : i32
    %c0_i32_1 = arith.constant 0 : i32
    %c0_i32_2 = arith.constant 0 : i32
    return %arg1, %c0_i32, %c0_i32_0, %c0_i32_1 : i32, i32, i32, i32
  }
  func.func @transform_2(%arg0: i32, %arg1: i32) -> (i32, i32, i32) {
    %c0_i32 = arith.constant 0 : i32
    %c0_i32_0 = arith.constant 0 : i32
    %c0_i32_1 = arith.constant 0 : i32
    return %arg1, %c0_i32, %c0_i32_0 : i32, i32, i32
  }
  func.func @transform_3(%arg0: i32, %arg1: i32) -> (i32, i32, i32) {
    %c0_i32 = arith.constant 0 : i32
    %c0_i32_0 = arith.constant 0 : i32
    %c0_i32_1 = arith.constant 0 : i32
    return %arg1, %c0_i32, %c0_i32_0 : i32, i32, i32
  }
  func.func @transform_4(%arg0: i32, %arg1: i32) -> (i32, i32, i32) {
    %c0_i32 = arith.constant 0 : i32
    %c0_i32_0 = arith.constant 0 : i32
    %c0_i32_1 = arith.constant 0 : i32
    return %arg1, %c0_i32, %c0_i32_0 : i32, i32, i32
  }
  func.func @transform_5(%arg0: i32, %arg1: i32) -> (i32, i32, i32) {
    %c0_i32 = arith.constant 0 : i32
    %c0_i32_0 = arith.constant 0 : i32
    %c0_i32_1 = arith.constant 0 : i32
    return %arg1, %c0_i32, %c0_i32_0 : i32, i32, i32
  }
  func.func @transform_6(%arg0: i32, %arg1: i32) -> (i32, i32, i32) {
    %c0_i32 = arith.constant 0 : i32
    %c0_i32_0 = arith.constant 0 : i32
    %c0_i32_1 = arith.constant 0 : i32
    return %arg1, %c0_i32, %c0_i32_0 : i32, i32, i32
  }
  func.func @transform_7(%arg0: i32, %arg1: i32) -> (i32, i32, i32) {
    %c0_i32 = arith.constant 0 : i32
    %c0_i32_0 = arith.constant 0 : i32
    %c0_i32_1 = arith.constant 0 : i32
    return %arg0, %c0_i32, %c0_i32_0 : i32, i32, i32
  }
}

</mosaic_0001>

<llo_original>
// kernel: encoder_forward.1
$region0: #{encoder_forward.1}
  #allocation0 [shape = 'u32[]', space=smem, size = 0x4, offset = 0x4, fixed_abs, tag = 'smem constant byte address 0x4 - core index']
  #allocation1 [shape = 'u32[72,128]{1,0:T(1,128)}', space=vmem, size = 0x9000, scoped, tag = 'internal scratch']
  #allocation2 [shape = 'f32[16,32]{1,0:T(8,128)}', space=vmem, size = 0x2000, scoped, tag = 'scratch operand']
  #allocation3 [shape = 'f32[16,32]{1,0:T(8,128)}', space=vmem, size = 0x2000, scoped, tag = 'scratch operand']
  %s0 = inlined_call_operand.vmem [shape: f32[2,8,32], index: 0, kind: input, shape index: {}]
  %s1 = inlined_call_operand.vmem [shape: bf16[2,3,32,32], index: 1, kind: input, shape index: {}]
  %s2 = inlined_call_operand.vmem [shape: bf16[2,32,32], index: 2, kind: input, shape index: {}]
  %s3 = inlined_call_operand.vmem [shape: bf16[2,32,64], index: 3, kind: input, shape index: {}]
  %s4 = inlined_call_operand.vmem [shape: bf16[2,64,32], index: 4, kind: input, shape index: {}]
  %s5 = inlined_call_operand.vmem [shape: f32[2,9,32], index: 5, kind: input, shape index: {}]
  %s6 = inlined_call_operand.vmem [shape: f32[2,1,64], index: 6, kind: input, shape index: {}]
  %s7 = inlined_call_operand.hbm [shape: f32[2,8,32], index: 7, kind: output, shape index: {}]
  %s8 = sld [smem:[#allocation0]]
  $region69: #{encoder_forward.1} parent=0
    _
  %s10 = ssub.s32 1, %s8
  %s11 = scalar_select 0, %s10, %s8
  $region1: #{encoder_forward.1} parent=0
    #allocation4 [shape = 'u8[8192]{0}', space=vmem, size = 0x2000, scoped, tag = 'output window, operand 0, single buffered']
    #allocation5 [shape = 's32[2]{0}', space=sflag, size = 0x8, scoped, tag = 'scoped memory for encoder_forward.1']
    %12 = vsyncpa [#allocation5], 0
    loop: start=0, step=1, limit=4
    $region2: #{encoder_forward.1} parent=1 // loop_pre_header
      _
    $region3: #{encoder_forward.1} parent=1 // loop_header
      %s14 = sphi 0, %s18
      %p15 = scmp.ge.s32.totalorder %s14, 4
      %s21 = sphi 0, %s33
      %s22 = sphi 0, %s29
      %s23 = sphi 0, %s21
      %s24 = sphi 0, %s22
      %s25 = sphi 0, %s23
      %s26 = sphi 0, %s24
      %s36 = sphi 0, %s38
      %s39 = sphi 0, %s36
      %s40 = sphi 0, %s39
      %s56 = sphi 0, %s40
      %s62 = sphi 0, %s64
      %s65 = sphi 0, %s62
      %s66 = sphi 0, %s65
      %s82 = sphi 0, %s66
      %s88 = sphi 0, %s90
      %s91 = sphi 0, %s88
      %s92 = sphi 0, %s91
      %s108 = sphi 0, %s92
      %s114 = sphi 0, %s116
      %s117 = sphi 0, %s114
      %s118 = sphi 0, %s117
      %s134 = sphi 0, %s118
      %s140 = sphi 0, %s142
      %s143 = sphi 0, %s140
      %s144 = sphi 0, %s143
      %s160 = sphi 0, %s144
      %s166 = sphi 0, %s168
      %s169 = sphi 0, %s166
      %s170 = sphi 0, %s169
      %s186 = sphi 0, %s170
      %s192 = sphi 0, %s194
      %s195 = sphi 0, %s192
      %s196 = sphi 0, %s195
      %s212 = sphi 0, %s196
      %s218 = sphi 0, %s220
      %s221 = sphi 0, %s218
      %s222 = sphi 0, %s221
      %s238 = sphi 0, %s222
    $region4: #{encoder_forward.1} parent=1 // loop_header_branch
      %17 = sbr.rel (%p15) target = $region8
    $region5: #{encoder_forward.1} parent=1 // loop_body
      %s19 = ssub.s32 %s14, 1
      %s20 = ssub.s32 %s14, 2
      %s27 = sadd.s32 1, %s22
      %p28 = scmp.ge.s32.totalorder %s27, 2
      %s29 = scalar_select %p28, 0, %s27
      %s30 = sadd.s32 1, %s21
      %s31 = scalar_select %p28, %s30, %s21
      %p32 = scmp.ge.s32.totalorder %s31, 1
      %s33 = scalar_select %p32, 0, %s31
      %s34 = ssub.s32 %s21, %s33
      %p35 = scmp.eq.s32.totalorder %s34, 0
      %s37 = sadd.s32 %s36, 1
      %s38 = scalar_select %p35, %s36, %s37
      %p41 = pneg %p35
      %p42 = scmp.eq.s32.totalorder %s14, 1
      %p43 = por %p41, %p42
      %p44 = scmp.ne.s32.totalorder %s36, %s39
      %p45 = scmp.eq.s32.totalorder %s14, 0
      %p46 = por %p44, %p45
      %p47 = scmp.ne.s32.totalorder %s36, %s39
      %p48 = scmp.eq.s32.totalorder %s19, 1
      %p49 = por %p47, %p48
      %p50 = scmp.ne.s32.totalorder %s39, %s40
      %p51 = scmp.eq.s32.totalorder %s19, 0
      %p52 = por %p50, %p51
      %p53 = scmp.ne.s32.totalorder %s39, %s40
      %p54 = scmp.eq.s32.totalorder %s20, 1
      %p55 = por %p53, %p54
      %p57 = scmp.ne.s32.totalorder %s40, %s56
      %p58 = scmp.eq.s32.totalorder %s20, 0
      %p59 = por %p57, %p58
      %s60 = ssub.s32 %s22, %s29
      %p61 = scmp.eq.s32.totalorder %s60, 0
      %s63 = sadd.s32 %s62, 1
      %s64 = scalar_select %p61, %s62, %s63
      %p67 = pneg %p61
      %p68 = scmp.eq.s32.totalorder %s14, 1
      %p69 = por %p67, %p68
      %p70 = scmp.ne.s32.totalorder %s62, %s65
      %p71 = scmp.eq.s32.totalorder %s14, 0
      %p72 = por %p70, %p71
      %p73 = scmp.ne.s32.totalorder %s62, %s65
      %p74 = scmp.eq.s32.totalorder %s19, 1
      %p75 = por %p73, %p74
      %p76 = scmp.ne.s32.totalorder %s65, %s66
      %p77 = scmp.eq.s32.totalorder %s19, 0
      %p78 = por %p76, %p77
      %p79 = scmp.ne.s32.totalorder %s65, %s66
      %p80 = scmp.eq.s32.totalorder %s20, 1
      %p81 = por %p79, %p80
      %p83 = scmp.ne.s32.totalorder %s66, %s82
      %p84 = scmp.eq.s32.totalorder %s20, 0
      %p85 = por %p83, %p84
      %s86 = ssub.s32 %s22, %s29
      %p87 = scmp.eq.s32.totalorder %s86, 0
      %s89 = sadd.s32 %s88, 1
      %s90 = scalar_select %p87, %s88, %s89
      %p93 = pneg %p87
      %p94 = scmp.eq.s32.totalorder %s14, 1
      %p95 = por %p93, %p94
      %p96 = scmp.ne.s32.totalorder %s88, %s91
      %p97 = scmp.eq.s32.totalorder %s14, 0
      %p98 = por %p96, %p97
      %p99 = scmp.ne.s32.totalorder %s88, %s91
      %p100 = scmp.eq.s32.totalorder %s19, 1
      %p101 = por %p99, %p100
      %p102 = scmp.ne.s32.totalorder %s91, %s92
      %p103 = scmp.eq.s32.totalorder %s19, 0
      %p104 = por %p102, %p103
      %p105 = scmp.ne.s32.totalorder %s91, %s92
      %p106 = scmp.eq.s32.totalorder %s20, 1
      %p107 = por %p105, %p106
      %p109 = scmp.ne.s32.totalorder %s92, %s108
      %p110 = scmp.eq.s32.totalorder %s20, 0
      %p111 = por %p109, %p110
      %s112 = ssub.s32 %s22, %s29
      %p113 = scmp.eq.s32.totalorder %s112, 0
      %s115 = sadd.s32 %s114, 1
      %s116 = scalar_select %p113, %s114, %s115
      %p119 = pneg %p113
      %p120 = scmp.eq.s32.totalorder %s14, 1
      %p121 = por %p119, %p120
      %p122 = scmp.ne.s32.totalorder %s114, %s117
      %p123 = scmp.eq.s32.totalorder %s14, 0
      %p124 = por %p122, %p123
      %p125 = scmp.ne.s32.totalorder %s114, %s117
      %p126 = scmp.eq.s32.totalorder %s19, 1
      %p127 = por %p125, %p126
      %p128 = scmp.ne.s32.totalorder %s117, %s118
      %p129 = scmp.eq.s32.totalorder %s19, 0
      %p130 = por %p128, %p129
      %p131 = scmp.ne.s32.totalorder %s117, %s118
      %p132 = scmp.eq.s32.totalorder %s20, 1
      %p133 = por %p131, %p132
      %p135 = scmp.ne.s32.totalorder %s118, %s134
      %p136 = scmp.eq.s32.totalorder %s20, 0
      %p137 = por %p135, %p136
      %s138 = ssub.s32 %s22, %s29
      %p139 = scmp.eq.s32.totalorder %s138, 0
      %s141 = sadd.s32 %s140, 1
      %s142 = scalar_select %p139, %s140, %s141
      %p145 = pneg %p139
      %p146 = scmp.eq.s32.totalorder %s14, 1
      %p147 = por %p145, %p146
      %p148 = scmp.ne.s32.totalorder %s140, %s143
      %p149 = scmp.eq.s32.totalorder %s14, 0
      %p150 = por %p148, %p149
      %p151 = scmp.ne.s32.totalorder %s140, %s143
      %p152 = scmp.eq.s32.totalorder %s19, 1
      %p153 = por %p151, %p152
      %p154 = scmp.ne.s32.totalorder %s143, %s144
      %p155 = scmp.eq.s32.totalorder %s19, 0
      %p156 = por %p154, %p155
      %p157 = scmp.ne.s32.totalorder %s143, %s144
      %p158 = scmp.eq.s32.totalorder %s20, 1
      %p159 = por %p157, %p158
      %p161 = scmp.ne.s32.totalorder %s144, %s160
      %p162 = scmp.eq.s32.totalorder %s20, 0
      %p163 = por %p161, %p162
      %s164 = ssub.s32 %s22, %s29
      %p165 = scmp.eq.s32.totalorder %s164, 0
      %s167 = sadd.s32 %s166, 1
      %s168 = scalar_select %p165, %s166, %s167
      %p171 = pneg %p165
      %p172 = scmp.eq.s32.totalorder %s14, 1
      %p173 = por %p171, %p172
      %p174 = scmp.ne.s32.totalorder %s166, %s169
      %p175 = scmp.eq.s32.totalorder %s14, 0
      %p176 = por %p174, %p175
      %p177 = scmp.ne.s32.totalorder %s166, %s169
      %p178 = scmp.eq.s32.totalorder %s19, 1
      %p179 = por %p177, %p178
      %p180 = scmp.ne.s32.totalorder %s169, %s170
      %p181 = scmp.eq.s32.totalorder %s19, 0
      %p182 = por %p180, %p181
      %p183 = scmp.ne.s32.totalorder %s169, %s170
      %p184 = scmp.eq.s32.totalorder %s20, 1
      %p185 = por %p183, %p184
      %p187 = scmp.ne.s32.totalorder %s170, %s186
      %p188 = scmp.eq.s32.totalorder %s20, 0
      %p189 = por %p187, %p188
      %s190 = ssub.s32 %s22, %s29
      %p191 = scmp.eq.s32.totalorder %s190, 0
      %s193 = sadd.s32 %s192, 1
      %s194 = scalar_select %p191, %s192, %s193
      %p197 = pneg %p191
      %p198 = scmp.eq.s32.totalorder %s14, 1
      %p199 = por %p197, %p198
      %p200 = scmp.ne.s32.totalorder %s192, %s195
      %p201 = scmp.eq.s32.totalorder %s14, 0
      %p202 = por %p200, %p201
      %p203 = scmp.ne.s32.totalorder %s192, %s195
      %p204 = scmp.eq.s32.totalorder %s19, 1
      %p205 = por %p203, %p204
      %p206 = scmp.ne.s32.totalorder %s195, %s196
      %p207 = scmp.eq.s32.totalorder %s19, 0
      %p208 = por %p206, %p207
      %p209 = scmp.ne.s32.totalorder %s195, %s196
      %p210 = scmp.eq.s32.totalorder %s20, 1
      %p211 = por %p209, %p210
      %p213 = scmp.ne.s32.totalorder %s196, %s212
      %p214 = scmp.eq.s32.totalorder %s20, 0
      %p215 = por %p213, %p214
      %s216 = ssub.s32 %s21, %s33
      %p217 = scmp.eq.s32.totalorder %s216, 0
      %s219 = sadd.s32 %s218, 1
      %s220 = scalar_select %p217, %s218, %s219
      %p223 = pneg %p217
      %p224 = scmp.eq.s32.totalorder %s14, 1
      %p225 = por %p223, %p224
      %p226 = scmp.ne.s32.totalorder %s218, %s221
      %p227 = scmp.eq.s32.totalorder %s14, 0
      %p228 = por %p226, %p227
      %p229 = scmp.ne.s32.totalorder %s218, %s221
      %p230 = scmp.eq.s32.totalorder %s19, 1
      %p231 = por %p229, %p230
      %p232 = scmp.ne.s32.totalorder %s221, %s222
      %p233 = scmp.eq.s32.totalorder %s19, 0
      %p234 = por %p232, %p233
      %p235 = scmp.ne.s32.totalorder %s221, %s222
      %p236 = scmp.eq.s32.totalorder %s20, 1
      %p237 = por %p235, %p236
      %p239 = scmp.ne.s32.totalorder %s222, %s238
      %p240 = scmp.eq.s32.totalorder %s20, 0
      %p241 = por %p239, %p240
      %p242 = scmp.le.s32.totalorder 1, %s14
      %p243 = scmp.lt.s32.totalorder %s14, 3
      %p244 = pnand %p242, %p243
      %p245 = pneg %p244
      // Predicated region
      $region9: #{encoder_forward.1} parent=5 // pred_check
        _
      $region10: #{encoder_forward.1} parent=5 // pred_check_branch
        %247 = sbr.rel (%p244) target = $region12
      $region11: #{encoder_forward.1} parent=5 // pred_region
        %s248 = ssub.s32 %s14, 1
        // Predicated region
        $region13: #{encoder_forward.1} parent=11 // pred_check
          %p249 = pneg %p52
        $region14: #{encoder_forward.1} parent=11 // pred_check_branch
          %251 = sbr.rel (%p249) target = $region16
        $region15: #{encoder_forward.1} parent=11 // pred_region
          %s252 = smul.u32 2, %s23
          %p253 = scmp.lt.s32.totalorder %s252, 1
          %s254 = scalar_select %p253, %s252, 1
          %s255 = smul.addr %s254, 8
          %s256 = scalar_lea.vmem %s0, %s255
          %s257 = smul.u32 2, %s23
        $region16: #{encoder_forward.1} parent=11 // pred_fallthru
          _
      $region12: #{encoder_forward.1} parent=5 // pred_fallthru
        _
      %p258 = scmp.lt.s32.totalorder %s14, 2
      // Predicated region
      $region17: #{encoder_forward.1} parent=5 // pred_check
        %p259 = pneg %p258
      $region18: #{encoder_forward.1} parent=5 // pred_check_branch
        %261 = sbr.rel (%p259) target = $region20
      $region19: #{encoder_forward.1} parent=5 // pred_region
        // Predicated region
        $region21: #{encoder_forward.1} parent=19 // pred_check
          %p262 = pneg %p72
        $region22: #{encoder_forward.1} parent=19 // pred_check_branch
          %264 = sbr.rel (%p262) target = $region24
        $region23: #{encoder_forward.1} parent=19 // pred_region
          %p265 = scmp.lt.s32.totalorder %s22, 1
          %s266 = scalar_select %p265, %s22, 1
          %s267 = smul.addr %s266, 12
          %s268 = smul.addr %s267, 4
          %s269 = scalar_lea.vmem %s1, %s268
        $region24: #{encoder_forward.1} parent=19 // pred_fallthru
          _
        // Predicated region
        $region25: #{encoder_forward.1} parent=19 // pred_check
          %p270 = pneg %p98
        $region26: #{encoder_forward.1} parent=19 // pred_check_branch
          %272 = sbr.rel (%p270) target = $region28
        $region27: #{encoder_forward.1} parent=19 // pred_region
          %p273 = scmp.lt.s32.totalorder %s22, 1
          %s274 = scalar_select %p273, %s22, 1
          %s275 = smul.addr %s274, 4
          %s276 = smul.addr %s275, 4
          %s277 = scalar_lea.vmem %s2, %s276
        $region28: #{encoder_forward.1} parent=19 // pred_fallthru
          _
        // Predicated region
        $region29: #{encoder_forward.1} parent=19 // pred_check
          %p278 = pneg %p124
        $region30: #{encoder_forward.1} parent=19 // pred_check_branch
          %280 = sbr.rel (%p278) target = $region32
        $region31: #{encoder_forward.1} parent=19 // pred_region
          %p281 = scmp.lt.s32.totalorder %s22, 1
          %s282 = scalar_select %p281, %s22, 1
          %s283 = smul.addr %s282, 4
          %s284 = smul.addr %s283, 4
          %s285 = scalar_lea.vmem %s3, %s284
        $region32: #{encoder_forward.1} parent=19 // pred_fallthru
          _
        // Predicated region
        $region33: #{encoder_forward.1} parent=19 // pred_check
          %p286 = pneg %p150
        $region34: #{encoder_forward.1} parent=19 // pred_check_branch
          %288 = sbr.rel (%p286) target = $region36
        $region35: #{encoder_forward.1} parent=19 // pred_region
          %p289 = scmp.lt.s32.totalorder %s22, 1
          %s290 = scalar_select %p289, %s22, 1
          %s291 = smul.addr %s290, 8
          %s292 = smul.addr %s291, 4
          %s293 = scalar_lea.vmem %s4, %s292
        $region36: #{encoder_forward.1} parent=19 // pred_fallthru
          _
        // Predicated region
        $region37: #{encoder_forward.1} parent=19 // pred_check
          %p294 = pneg %p176
        $region38: #{encoder_forward.1} parent=19 // pred_check_branch
          %296 = sbr.rel (%p294) target = $region40
        $region39: #{encoder_forward.1} parent=19 // pred_region
          %p297 = scmp.lt.s32.totalorder %s22, 1
          %s298 = scalar_select %p297, %s22, 1
          %s299 = smul.addr %s298, 2
          %s300 = smul.addr %s299, 8
          %s301 = scalar_lea.vmem %s5, %s300
        $region40: #{encoder_forward.1} parent=19 // pred_fallthru
          _
        // Predicated region
        $region41: #{encoder_forward.1} parent=19 // pred_check
          %p302 = pneg %p202
        $region42: #{encoder_forward.1} parent=19 // pred_check_branch
          %304 = sbr.rel (%p302) target = $region44
        $region43: #{encoder_forward.1} parent=19 // pred_region
          %p305 = scmp.lt.s32.totalorder %s22, 1
          %s306 = scalar_select %p305, %s22, 1
          %s307 = scalar_lea.vmem %s6, %s306
        $region44: #{encoder_forward.1} parent=19 // pred_fallthru
          _
      $region20: #{encoder_forward.1} parent=5 // pred_fallthru
        _
      %p308 = scmp.le.s32.totalorder 1, %s14
      %p309 = scmp.lt.s32.totalorder %s14, 3
      %p310 = pnand %p308, %p309
      %p311 = pneg %p310
      // Predicated region
      $region45: #{encoder_forward.1} parent=5 // pred_check
        _
      $region46: #{encoder_forward.1} parent=5 // pred_check_branch
        %313 = sbr.rel (%p310) target = $region48
      $region47: #{encoder_forward.1} parent=5 // pred_region
        %s314 = ssub.s32 %s14, 1
        %s315 = smul.u32 2, %s23
        %p316 = scmp.lt.s32.totalorder %s315, 1
        %s317 = scalar_select %p316, %s315, 1
        %s318 = smul.addr %s317, 8
        %s319 = scalar_lea.vmem %s0, %s318
        %p320 = pneg %p52
        %p321 = pneg %p49
        %p322 = scmp.lt.s32.totalorder %s24, 1
        %s323 = scalar_select %p322, %s24, 1
        %s324 = smul.addr %s323, 12
        %s325 = smul.addr %s324, 4
        %s326 = scalar_lea.vmem %s1, %s325
        %p327 = pneg %p78
        %p328 = pneg %p75
        %p329 = scmp.lt.s32.totalorder %s24, 1
        %s330 = scalar_select %p329, %s24, 1
        %s331 = smul.addr %s330, 4
        %s332 = smul.addr %s331, 4
        %s333 = scalar_lea.vmem %s2, %s332
        %p334 = pneg %p104
        %p335 = pneg %p101
        %p336 = scmp.lt.s32.totalorder %s24, 1
        %s337 = scalar_select %p336, %s24, 1
        %s338 = smul.addr %s337, 4
        %s339 = smul.addr %s338, 4
        %s340 = scalar_lea.vmem %s3, %s339
        %p341 = pneg %p130
        %p342 = pneg %p127
        %p343 = scmp.lt.s32.totalorder %s24, 1
        %s344 = scalar_select %p343, %s24, 1
        %s345 = smul.addr %s344, 8
        %s346 = smul.addr %s345, 4
        %s347 = scalar_lea.vmem %s4, %s346
        %p348 = pneg %p156
        %p349 = pneg %p153
        %p350 = scmp.lt.s32.totalorder %s24, 1
        %s351 = scalar_select %p350, %s24, 1
        %s352 = smul.addr %s351, 2
        %s353 = smul.addr %s352, 8
        %s354 = scalar_lea.vmem %s5, %s353
        %p355 = pneg %p182
        %p356 = pneg %p179
        %p357 = scmp.lt.s32.totalorder %s24, 1
        %s358 = scalar_select %p357, %s24, 1
        %s359 = scalar_lea.vmem %s6, %s358
        %p360 = pneg %p208
        %p361 = pneg %p205
        %p362 = pneg %p234
        %p363 = pneg %p231
        %s364 = smul.u32 2, %s23
        %p365 = scmp.lt.s32.totalorder %s364, 1
        %s366 = scalar_select %p365, %s364, 1
        %s367 = smul.addr %s366, 8
        %s368 = scalar_lea.vmem %s0, %s367
        %s369 = smul.u32 2, %s23
        %p370 = scmp.lt.s32.totalorder %s24, 1
        %s371 = scalar_select %p370, %s24, 1
        %s372 = smul.addr %s371, 12
        %s373 = smul.addr %s372, 4
        %s374 = scalar_lea.vmem %s1, %s373
        %p375 = scmp.lt.s32.totalorder %s24, 1
        %s376 = scalar_select %p375, %s24, 1
        %s377 = smul.addr %s376, 4
        %s378 = smul.addr %s377, 4
        %s379 = scalar_lea.vmem %s2, %s378
        %p380 = scmp.lt.s32.totalorder %s24, 1
        %s381 = scalar_select %p380, %s24, 1
        %s382 = smul.addr %s381, 4
        %s383 = smul.addr %s382, 4
        %s384 = scalar_lea.vmem %s3, %s383
        %p385 = scmp.lt.s32.totalorder %s24, 1
        %s386 = scalar_select %p385, %s24, 1
        %s387 = smul.addr %s386, 8
        %s388 = smul.addr %s387, 4
        %s389 = scalar_lea.vmem %s4, %s388
        %p390 = scmp.lt.s32.totalorder %s24, 1
        %s391 = scalar_select %p390, %s24, 1
        %s392 = smul.addr %s391, 2
        %s393 = smul.addr %s392, 8
        %s394 = scalar_lea.vmem %s5, %s393
        %p395 = scmp.lt.s32.totalorder %s24, 1
        %s396 = scalar_select %p395, %s24, 1
        %s397 = scalar_lea.vmem %s6, %s396
        %s398 = smul.u32 2, %s23
        %p400 = scmp.eq.s32.totalorder %s24, 0
        // Predicated region
        $region49: #{encoder_forward.1} parent=47 // pred_check
          %p401 = pneg %p400
        $region50: #{encoder_forward.1} parent=47 // pred_check_branch
          %403 = sbr.rel (%p401) target = $region52
        $region51: #{encoder_forward.1} parent=47 // pred_region
          %v404 = vld [vmem:[%s368] sm:$0xff]
          %vm405 = vcmask 261120
          %406 = vst.msk [vmem:[#allocation2] sm:$0xff] %vm405, %v404
          %s407 = scalar_lea.vmem %s368, 8
          %v408 = vld [vmem:[%s407] sm:$0xff]
          %409 = vst.msk [vmem:[#allocation2 + $0x8] sm:$0xff] %vm405, %v408
        $region52: #{encoder_forward.1} parent=47 // pred_fallthru
          _
        %v410 = vld [vmem:[#allocation2] sm:$0xff]
        %v411 = vld [vmem:[#allocation2 + $0x8] sm:$0xff]
        %v412 = vpack.c.bf16 %v411, %v410
        %v413 = vld [vmem:[%s394] sm:$0xff]
        %v414 = vld [vmem:[%s394 + $0x8] sm:$0x1]
        %v415 = vld [vmem:[%s374] sm:$0xf]
        %v416 = vld [vmem:[%s374 + $0x4] sm:$0xf]
        %v417 = vld [vmem:[%s374 + $0x8] sm:$0xf]
        %v418 = vld [vmem:[%s374 + $0xc] sm:$0xf]
        %v419 = vld [vmem:[%s374 + $0x10] sm:$0xf]
        %v420 = vld [vmem:[%s374 + $0x14] sm:$0xf]
        %v421 = vld [vmem:[%s374 + $0x18] sm:$0xf]
        %v422 = vld [vmem:[%s374 + $0x1c] sm:$0xf]
        %v423 = vld [vmem:[%s374 + $0x20] sm:$0xf]
        %v424 = vld [vmem:[%s374 + $0x24] sm:$0xf]
        %v425 = vld [vmem:[%s374 + $0x28] sm:$0xf]
        %v426 = vld [vmem:[%s374 + $0x2c] sm:$0xf]
        %v427 = vperm.slane %v413, 0
        %v432 = vunpack.c.l.b16 %v415
        %v433 = vunpack.c.l.b16 %v416
        %v434 = vunpack.c.l.b16 %v417
        %v435 = vunpack.c.l.b16 %v418
        %v436 = vpack.c.b16 %v433, %v432
        %v437 = vpack.c.b16 %v435, %v434
        %vm440 = vcmask 261120
        %v442 = vsel %vm440, %v412, 0
        %444 = vmatpush.bf16.msra.mxu0 0
        %445 = vmatpush.bf16.msra.mxu0 0
        %446 = vmatpush.bf16.msra.mxu0 0
        %447 = vmatpush.bf16.msra.mxu0 0
        %448 = vmatpush.bf16.msra.mxu0 0
        %449 = vmatpush.bf16.msra.mxu0 0
        %450 = vmatpush.bf16.msra.mxu0 %v437
        %451 = vmatpush.bf16.msra.mxu0 %v436
        %452 = vmatmul.bf16.gmra.mxu0 %v442
        %v453 = vpop.f32.mrf.mxu0
        %v454 = vadd.f32 %v427, %v453
        %v455 = vpop.f32.mrf.mxu0
        %v456 = vadd.f32 %v427, %v455
        %457 = vdwg.mxu0
        %v458 = vperm.slane %v413, 1
        %v463 = vunpack.c.l.b16 %v419
        %v464 = vunpack.c.l.b16 %v420
        %v465 = vunpack.c.l.b16 %v421
        %v466 = vunpack.c.l.b16 %v422
        %v467 = vpack.c.b16 %v464, %v463
        %v468 = vpack.c.b16 %v466, %v465
        %471 = vmatpush.bf16.msra.mxu0 0
        %472 = vmatpush.bf16.msra.mxu0 0
        %473 = vmatpush.bf16.msra.mxu0 0
        %474 = vmatpush.bf16.msra.mxu0 0
        %475 = vmatpush.bf16.msra.mxu0 0
        %476 = vmatpush.bf16.msra.mxu0 0
        %477 = vmatpush.bf16.msra.mxu0 %v468
        %478 = vmatpush.bf16.msra.mxu0 %v467
        %479 = vmatmul.bf16.gmra.mxu0 %v442
        %v480 = vpop.f32.mrf.mxu0
        %v481 = vadd.f32 %v458, %v480
        %v482 = vpop.f32.mrf.mxu0
        %v483 = vadd.f32 %v458, %v482
        %484 = vdwg.mxu0
        %v485 = vperm.slane %v413, 2
        %v490 = vunpack.c.l.b16 %v423
        %v491 = vunpack.c.l.b16 %v424
        %v492 = vunpack.c.l.b16 %v425
        %v493 = vunpack.c.l.b16 %v426
        %v494 = vpack.c.b16 %v491, %v490
        %v495 = vpack.c.b16 %v493, %v492
        %498 = vmatpush.bf16.msra.mxu0 0
        %499 = vmatpush.bf16.msra.mxu0 0
        %500 = vmatpush.bf16.msra.mxu0 0
        %501 = vmatpush.bf16.msra.mxu0 0
        %502 = vmatpush.bf16.msra.mxu0 0
        %503 = vmatpush.bf16.msra.mxu0 0
        %504 = vmatpush.bf16.msra.mxu0 %v495
        %505 = vmatpush.bf16.msra.mxu0 %v494
        %506 = vmatmul.bf16.gmra.mxu0 %v442
        %v507 = vpop.f32.mrf.mxu0
        %v508 = vadd.f32 %v485, %v507
        %v509 = vpop.f32.mrf.mxu0
        %v510 = vadd.f32 %v485, %v509
        %511 = vdwg.mxu0
        %vm512 = vcmask 64512
        %v514 = vsel %vm512, %v454, 0
        %v517 = vsel %vm512, %v481, 0
        %519 = vmatpush.xpose.msra.mxu0 0.0
        %520 = vmatpush.xpose.msra.mxu0 0.0
        %521 = vmatpush.xpose.msra.mxu0 0.0
        %522 = vmatpush.xpose.msra.mxu0 0.0
        %523 = vmatpush.xpose.msra.mxu0 0.0
        %524 = vmatpush.xpose.msra.mxu0 0.0
        %525 = vmatpush.xpose.msra.mxu0 0.0
        %526 = vmatpush.xpose.msra.mxu0 0.0
        %527 = vmatpush.xpose.msra.mxu0 0.0
        %528 = vmatpush.xpose.msra.mxu0 0.0
        %529 = vmatpush.xpose.msra.mxu0 0.0
        %530 = vmatpush.xpose.msra.mxu0 0.0
        %531 = vmatpush.xpose.msra.mxu0 0.0
        %532 = vmatpush.xpose.msra.mxu0 0.0
        %533 = vmatpush.xpose.msra.mxu0 0.0
        %534 = vmatpush.xpose.msra.mxu0 %v517
        %535 = vmatmul.f32.gmra.mxu0 %v514
        %v536 = vpop.f32.mrf.mxu0
        %v537 = vadd.f32 0.0, %v536
        %538 = vdwg.mxu0
        %v539 = vsel %vm512, %v537, -inf
        %540 = vmax.xlane.f32.xlu0 %v539
        %v541 = vpop.xlane.xlu0 %540
        %v542 = vsub.f32 %v537, %v541
        %v543 = vmul.f32 %v542, 1.442695
        %v544 = vpow.pop %v543
        %v545 = vsel %vm512, %v544, 0.0
        %546 = vadd.xlane.f32.xlu0 %v545
        %v547 = vpop.xlane.xlu0 %546
        %v548 = vrcp.pop %v547
        %v549 = vmul.f32 %v544, %v548
        %v551 = vsel %vm512, %v549, 0
        %553 = vmatpush.msra.mxu0 0.0
        %554 = vmatpush.msra.mxu0 0.0
        %555 = vmatpush.msra.mxu0 0.0
        %556 = vmatpush.msra.mxu0 0.0
        %557 = vmatpush.msra.mxu0 0.0
        %558 = vmatpush.msra.mxu0 0.0
        %559 = vmatpush.msra.mxu0 0.0
        %560 = vmatpush.msra.mxu0 0.0
        %561 = vmatpush.msra.mxu0 0.0
        %562 = vmatpush.msra.mxu0 0.0
        %563 = vmatpush.msra.mxu0 0.0
        %564 = vmatpush.msra.mxu0 0.0
        %565 = vmatpush.msra.mxu0 0.0
        %566 = vmatpush.msra.mxu0 0.0
        %567 = vmatpush.msra.mxu0 0.0
        %568 = vmatpush.msra.mxu0 %v508
        %569 = vmatmul.f32.gmra.mxu0 %v551
        %v570 = vpop.f32.mrf.mxu0
        %v571 = vadd.f32 0.0, %v570
        %572 = vdwg.mxu0
        %573 = vst.msk [vmem:[#allocation3] sm:$0xff] %vm512, %v571
        %574 = vrot.lane.b32.xlu0 %v454, 120
        %v575 = vpop.permute.xlu0 %574
        %576 = vrot.lane.b32.xlu0 %v481, 120
        %v577 = vpop.permute.xlu0 %576
        %v578 = vsel %vm512, %v575, 0
        %v580 = vsel %vm512, %v577, 0
        %582 = vmatpush.xpose.msra.mxu0 0.0
        %583 = vmatpush.xpose.msra.mxu0 0.0
        %584 = vmatpush.xpose.msra.mxu0 0.0
        %585 = vmatpush.xpose.msra.mxu0 0.0
        %586 = vmatpush.xpose.msra.mxu0 0.0
        %587 = vmatpush.xpose.msra.mxu0 0.0
        %588 = vmatpush.xpose.msra.mxu0 0.0
        %589 = vmatpush.xpose.msra.mxu0 0.0
        %590 = vmatpush.xpose.msra.mxu0 0.0
        %591 = vmatpush.xpose.msra.mxu0 0.0
        %592 = vmatpush.xpose.msra.mxu0 0.0
        %593 = vmatpush.xpose.msra.mxu0 0.0
        %594 = vmatpush.xpose.msra.mxu0 0.0
        %595 = vmatpush.xpose.msra.mxu0 0.0
        %596 = vmatpush.xpose.msra.mxu0 0.0
        %597 = vmatpush.xpose.msra.mxu0 %v580
        %598 = vmatmul.f32.gmra.mxu0 %v578
        %v599 = vpop.f32.mrf.mxu0
        %v600 = vadd.f32 0.0, %v599
        %601 = vdwg.mxu0
        %v602 = vsel %vm512, %v600, -inf
        %603 = vmax.xlane.f32.xlu0 %v602
        %v604 = vpop.xlane.xlu0 %603
        %v605 = vsub.f32 %v600, %v604
        %v606 = vmul.f32 %v605, 1.442695
        %v607 = vpow.pop %v606
        %v608 = vsel %vm512, %v607, 0.0
        %609 = vadd.xlane.f32.xlu0 %v608
        %v610 = vpop.xlane.xlu0 %609
        %v611 = vrcp.pop %v610
        %v612 = vmul.f32 %v607, %v611
        %614 = vrot.lane.b32.xlu0 %v508, 120
        %v615 = vpop.permute.xlu0 %614
        %v618 = vsel %vm512, %v612, 0
        %620 = vmatpush.msra.mxu0 0.0
        %621 = vmatpush.msra.mxu0 0.0
        %622 = vmatpush.msra.mxu0 0.0
        %623 = vmatpush.msra.mxu0 0.0
        %624 = vmatpush.msra.mxu0 0.0
        %625 = vmatpush.msra.mxu0 0.0
        %626 = vmatpush.msra.mxu0 0.0
        %627 = vmatpush.msra.mxu0 0.0
        %628 = vmatpush.msra.mxu0 0.0
        %629 = vmatpush.msra.mxu0 0.0
        %630 = vmatpush.msra.mxu0 0.0
        %631 = vmatpush.msra.mxu0 0.0
        %632 = vmatpush.msra.mxu0 0.0
        %633 = vmatpush.msra.mxu0 0.0
        %634 = vmatpush.msra.mxu0 0.0
        %635 = vmatpush.msra.mxu0 %v615
        %636 = vmatmul.f32.gmra.mxu0 %v618
        %v637 = vpop.f32.mrf.mxu0
        %v638 = vadd.f32 0.0, %v637
        %639 = vdwg.mxu0
        %641 = vrot.lane.b32.xlu0 %v638, 8
        %v642 = vpop.permute.xlu0 %641
        %vm644 = vcmask 130112
        %645 = vst.msk [vmem:[#allocation3] sm:$0xff] %vm644, %v642
        %646 = vrot.lane.b32.xlu0 %v454, 112
        %v647 = vpop.permute.xlu0 %646
        %648 = vrot.lane.b32.xlu0 %v481, 112
        %v649 = vpop.permute.xlu0 %648
        %v650 = vsel %vm512, %v647, 0
        %v652 = vsel %vm512, %v649, 0
        %654 = vmatpush.xpose.msra.mxu0 0.0
        %655 = vmatpush.xpose.msra.mxu0 0.0
        %656 = vmatpush.xpose.msra.mxu0 0.0
        %657 = vmatpush.xpose.msra.mxu0 0.0
        %658 = vmatpush.xpose.msra.mxu0 0.0
        %659 = vmatpush.xpose.msra.mxu0 0.0
        %660 = vmatpush.xpose.msra.mxu0 0.0
        %661 = vmatpush.xpose.msra.mxu0 0.0
        %662 = vmatpush.xpose.msra.mxu0 0.0
        %663 = vmatpush.xpose.msra.mxu0 0.0
        %664 = vmatpush.xpose.msra.mxu0 0.0
        %665 = vmatpush.xpose.msra.mxu0 0.0
        %666 = vmatpush.xpose.msra.mxu0 0.0
        %667 = vmatpush.xpose.msra.mxu0 0.0
        %668 = vmatpush.xpose.msra.mxu0 0.0
        %669 = vmatpush.xpose.msra.mxu0 %v652
        %670 = vmatmul.f32.gmra.mxu0 %v650
        %v671 = vpop.f32.mrf.mxu0
        %v672 = vadd.f32 0.0, %v671
        %673 = vdwg.mxu0
        %v674 = vsel %vm512, %v672, -inf
        %675 = vmax.xlane.f32.xlu0 %v674
        %v676 = vpop.xlane.xlu0 %675
        %v677 = vsub.f32 %v672, %v676
        %v678 = vmul.f32 %v677, 1.442695
        %v679 = vpow.pop %v678
        %v680 = vsel %vm512, %v679, 0.0
        %681 = vadd.xlane.f32.xlu0 %v680
        %v682 = vpop.xlane.xlu0 %681
        %v683 = vrcp.pop %v682
        %v684 = vmul.f32 %v679, %v683
        %685 = vrot.lane.b32.xlu0 %v508, 112
        %v686 = vpop.permute.xlu0 %685
        %v689 = vsel %vm512, %v684, 0
        %691 = vmatpush.msra.mxu0 0.0
        %692 = vmatpush.msra.mxu0 0.0
        %693 = vmatpush.msra.mxu0 0.0
        %694 = vmatpush.msra.mxu0 0.0
        %695 = vmatpush.msra.mxu0 0.0
        %696 = vmatpush.msra.mxu0 0.0
        %697 = vmatpush.msra.mxu0 0.0
        %698 = vmatpush.msra.mxu0 0.0
        %699 = vmatpush.msra.mxu0 0.0
        %700 = vmatpush.msra.mxu0 0.0
        %701 = vmatpush.msra.mxu0 0.0
        %702 = vmatpush.msra.mxu0 0.0
        %703 = vmatpush.msra.mxu0 0.0
        %704 = vmatpush.msra.mxu0 0.0
        %705 = vmatpush.msra.mxu0 0.0
        %706 = vmatpush.msra.mxu0 %v686
        %707 = vmatmul.f32.gmra.mxu0 %v689
        %v708 = vpop.f32.mrf.mxu0
        %v709 = vadd.f32 0.0, %v708
        %710 = vdwg.mxu0
        %712 = vrot.lane.b32.xlu0 %v709, 16
        %v713 = vpop.permute.xlu0 %712
        %vm715 = vcmask 195712
        %716 = vst.msk [vmem:[#allocation3] sm:$0xff] %vm715, %v713
        %717 = vrot.lane.b32.xlu0 %v454, 104
        %v718 = vpop.permute.xlu0 %717
        %719 = vrot.lane.b32.xlu0 %v481, 104
        %v720 = vpop.permute.xlu0 %719
        %v721 = vsel %vm512, %v718, 0
        %v723 = vsel %vm512, %v720, 0
        %725 = vmatpush.xpose.msra.mxu0 0.0
        %726 = vmatpush.xpose.msra.mxu0 0.0
        %727 = vmatpush.xpose.msra.mxu0 0.0
        %728 = vmatpush.xpose.msra.mxu0 0.0
        %729 = vmatpush.xpose.msra.mxu0 0.0
        %730 = vmatpush.xpose.msra.mxu0 0.0
        %731 = vmatpush.xpose.msra.mxu0 0.0
        %732 = vmatpush.xpose.msra.mxu0 0.0
        %733 = vmatpush.xpose.msra.mxu0 0.0
        %734 = vmatpush.xpose.msra.mxu0 0.0
        %735 = vmatpush.xpose.msra.mxu0 0.0
        %736 = vmatpush.xpose.msra.mxu0 0.0
        %737 = vmatpush.xpose.msra.mxu0 0.0
        %738 = vmatpush.xpose.msra.mxu0 0.0
        %739 = vmatpush.xpose.msra.mxu0 0.0
        %740 = vmatpush.xpose.msra.mxu0 %v723
        %741 = vmatmul.f32.gmra.mxu0 %v721
        %v742 = vpop.f32.mrf.mxu0
        %v743 = vadd.f32 0.0, %v742
        %744 = vdwg.mxu0
        %v745 = vsel %vm512, %v743, -inf
        %746 = vmax.xlane.f32.xlu0 %v745
        %v747 = vpop.xlane.xlu0 %746
        %v748 = vsub.f32 %v743, %v747
        %v749 = vmul.f32 %v748, 1.442695
        %v750 = vpow.pop %v749
        %v751 = vsel %vm512, %v750, 0.0
        %752 = vadd.xlane.f32.xlu0 %v751
        %v753 = vpop.xlane.xlu0 %752
        %v754 = vrcp.pop %v753
        %v755 = vmul.f32 %v750, %v754
        %756 = vrot.lane.b32.xlu0 %v508, 104
        %v757 = vpop.permute.xlu0 %756
        %v760 = vsel %vm512, %v755, 0
        %762 = vmatpush.msra.mxu0 0.0
        %763 = vmatpush.msra.mxu0 0.0
        %764 = vmatpush.msra.mxu0 0.0
        %765 = vmatpush.msra.mxu0 0.0
        %766 = vmatpush.msra.mxu0 0.0
        %767 = vmatpush.msra.mxu0 0.0
        %768 = vmatpush.msra.mxu0 0.0
        %769 = vmatpush.msra.mxu0 0.0
        %770 = vmatpush.msra.mxu0 0.0
        %771 = vmatpush.msra.mxu0 0.0
        %772 = vmatpush.msra.mxu0 0.0
        %773 = vmatpush.msra.mxu0 0.0
        %774 = vmatpush.msra.mxu0 0.0
        %775 = vmatpush.msra.mxu0 0.0
        %776 = vmatpush.msra.mxu0 0.0
        %777 = vmatpush.msra.mxu0 %v757
        %778 = vmatmul.f32.gmra.mxu0 %v760
        %v779 = vpop.f32.mrf.mxu0
        %v780 = vadd.f32 0.0, %v779
        %781 = vdwg.mxu0
        %783 = vrot.lane.b32.xlu0 %v780, 24
        %v784 = vpop.permute.xlu0 %783
        %vm786 = vcmask 261312
        %787 = vst.msk [vmem:[#allocation3] sm:$0xff] %vm786, %v784
        %v789 = vsel %vm512, %v456, 0
        %v792 = vsel %vm512, %v483, 0
        %794 = vmatpush.xpose.msra.mxu0 0.0
        %795 = vmatpush.xpose.msra.mxu0 0.0
        %796 = vmatpush.xpose.msra.mxu0 0.0
        %797 = vmatpush.xpose.msra.mxu0 0.0
        %798 = vmatpush.xpose.msra.mxu0 0.0
        %799 = vmatpush.xpose.msra.mxu0 0.0
        %800 = vmatpush.xpose.msra.mxu0 0.0
        %801 = vmatpush.xpose.msra.mxu0 0.0
        %802 = vmatpush.xpose.msra.mxu0 0.0
        %803 = vmatpush.xpose.msra.mxu0 0.0
        %804 = vmatpush.xpose.msra.mxu0 0.0
        %805 = vmatpush.xpose.msra.mxu0 0.0
        %806 = vmatpush.xpose.msra.mxu0 0.0
        %807 = vmatpush.xpose.msra.mxu0 0.0
        %808 = vmatpush.xpose.msra.mxu0 0.0
        %809 = vmatpush.xpose.msra.mxu0 %v792
        %810 = vmatmul.f32.gmra.mxu0 %v789
        %v811 = vpop.f32.mrf.mxu0
        %v812 = vadd.f32 0.0, %v811
        %813 = vdwg.mxu0
        %v814 = vsel %vm512, %v812, -inf
        %815 = vmax.xlane.f32.xlu0 %v814
        %v816 = vpop.xlane.xlu0 %815
        %v817 = vsub.f32 %v812, %v816
        %v818 = vmul.f32 %v817, 1.442695
        %v819 = vpow.pop %v818
        %v820 = vsel %vm512, %v819, 0.0
        %821 = vadd.xlane.f32.xlu0 %v820
        %v822 = vpop.xlane.xlu0 %821
        %v823 = vrcp.pop %v822
        %v824 = vmul.f32 %v819, %v823
        %v826 = vsel %vm512, %v824, 0
        %828 = vmatpush.msra.mxu0 0.0
        %829 = vmatpush.msra.mxu0 0.0
        %830 = vmatpush.msra.mxu0 0.0
        %831 = vmatpush.msra.mxu0 0.0
        %832 = vmatpush.msra.mxu0 0.0
        %833 = vmatpush.msra.mxu0 0.0
        %834 = vmatpush.msra.mxu0 0.0
        %835 = vmatpush.msra.mxu0 0.0
        %836 = vmatpush.msra.mxu0 0.0
        %837 = vmatpush.msra.mxu0 0.0
        %838 = vmatpush.msra.mxu0 0.0
        %839 = vmatpush.msra.mxu0 0.0
        %840 = vmatpush.msra.mxu0 0.0
        %841 = vmatpush.msra.mxu0 0.0
        %842 = vmatpush.msra.mxu0 0.0
        %843 = vmatpush.msra.mxu0 %v510
        %844 = vmatmul.f32.gmra.mxu0 %v826
        %v845 = vpop.f32.mrf.mxu0
        %v846 = vadd.f32 0.0, %v845
        %847 = vdwg.mxu0
        %848 = vst.msk [vmem:[#allocation3 + $0x8] sm:$0xff] %vm512, %v846
        %849 = vrot.lane.b32.xlu0 %v456, 120
        %v850 = vpop.permute.xlu0 %849
        %851 = vrot.lane.b32.xlu0 %v483, 120
        %v852 = vpop.permute.xlu0 %851
        %v853 = vsel %vm512, %v850, 0
        %v855 = vsel %vm512, %v852, 0
        %857 = vmatpush.xpose.msra.mxu0 0.0
        %858 = vmatpush.xpose.msra.mxu0 0.0
        %859 = vmatpush.xpose.msra.mxu0 0.0
        %860 = vmatpush.xpose.msra.mxu0 0.0
        %861 = vmatpush.xpose.msra.mxu0 0.0
        %862 = vmatpush.xpose.msra.mxu0 0.0
        %863 = vmatpush.xpose.msra.mxu0 0.0
        %864 = vmatpush.xpose.msra.mxu0 0.0
        %865 = vmatpush.xpose.msra.mxu0 0.0
        %866 = vmatpush.xpose.msra.mxu0 0.0
        %867 = vmatpush.xpose.msra.mxu0 0.0
        %868 = vmatpush.xpose.msra.mxu0 0.0
        %869 = vmatpush.xpose.msra.mxu0 0.0
        %870 = vmatpush.xpose.msra.mxu0 0.0
        %871 = vmatpush.xpose.msra.mxu0 0.0
        %872 = vmatpush.xpose.msra.mxu0 %v855
        %873 = vmatmul.f32.gmra.mxu0 %v853
        %v874 = vpop.f32.mrf.mxu0
        %v875 = vadd.f32 0.0, %v874
        %876 = vdwg.mxu0
        %v877 = vsel %vm512, %v875, -inf
        %878 = vmax.xlane.f32.xlu0 %v877
        %v879 = vpop.xlane.xlu0 %878
        %v880 = vsub.f32 %v875, %v879
        %v881 = vmul.f32 %v880, 1.442695
        %v882 = vpow.pop %v881
        %v883 = vsel %vm512, %v882, 0.0
        %884 = vadd.xlane.f32.xlu0 %v883
        %v885 = vpop.xlane.xlu0 %884
        %v886 = vrcp.pop %v885
        %v887 = vmul.f32 %v882, %v886
        %889 = vrot.lane.b32.xlu0 %v510, 120
        %v890 = vpop.permute.xlu0 %889
        %v893 = vsel %vm512, %v887, 0
        %895 = vmatpush.msra.mxu0 0.0
        %896 = vmatpush.msra.mxu0 0.0
        %897 = vmatpush.msra.mxu0 0.0
        %898 = vmatpush.msra.mxu0 0.0
        %899 = vmatpush.msra.mxu0 0.0
        %900 = vmatpush.msra.mxu0 0.0
        %901 = vmatpush.msra.mxu0 0.0
        %902 = vmatpush.msra.mxu0 0.0
        %903 = vmatpush.msra.mxu0 0.0
        %904 = vmatpush.msra.mxu0 0.0
        %905 = vmatpush.msra.mxu0 0.0
        %906 = vmatpush.msra.mxu0 0.0
        %907 = vmatpush.msra.mxu0 0.0
        %908 = vmatpush.msra.mxu0 0.0
        %909 = vmatpush.msra.mxu0 0.0
        %910 = vmatpush.msra.mxu0 %v890
        %911 = vmatmul.f32.gmra.mxu0 %v893
        %v912 = vpop.f32.mrf.mxu0
        %v913 = vadd.f32 0.0, %v912
        %914 = vdwg.mxu0
        %916 = vrot.lane.b32.xlu0 %v913, 8
        %v917 = vpop.permute.xlu0 %916
        %919 = vst.msk [vmem:[#allocation3 + $0x8] sm:$0xff] %vm644, %v917
        %920 = vrot.lane.b32.xlu0 %v456, 112
        %v921 = vpop.permute.xlu0 %920
        %922 = vrot.lane.b32.xlu0 %v483, 112
        %v923 = vpop.permute.xlu0 %922
        %v924 = vsel %vm512, %v921, 0
        %v926 = vsel %vm512, %v923, 0
        %928 = vmatpush.xpose.msra.mxu0 0.0
        %929 = vmatpush.xpose.msra.mxu0 0.0
        %930 = vmatpush.xpose.msra.mxu0 0.0
        %931 = vmatpush.xpose.msra.mxu0 0.0
        %932 = vmatpush.xpose.msra.mxu0 0.0
        %933 = vmatpush.xpose.msra.mxu0 0.0
        %934 = vmatpush.xpose.msra.mxu0 0.0
        %935 = vmatpush.xpose.msra.mxu0 0.0
        %936 = vmatpush.xpose.msra.mxu0 0.0
        %937 = vmatpush.xpose.msra.mxu0 0.0
        %938 = vmatpush.xpose.msra.mxu0 0.0
        %939 = vmatpush.xpose.msra.mxu0 0.0
        %940 = vmatpush.xpose.msra.mxu0 0.0
        %941 = vmatpush.xpose.msra.mxu0 0.0
        %942 = vmatpush.xpose.msra.mxu0 0.0
        %943 = vmatpush.xpose.msra.mxu0 %v926
        %944 = vmatmul.f32.gmra.mxu0 %v924
        %v945 = vpop.f32.mrf.mxu0
        %v946 = vadd.f32 0.0, %v945
        %947 = vdwg.mxu0
        %v948 = vsel %vm512, %v946, -inf
        %949 = vmax.xlane.f32.xlu0 %v948
        %v950 = vpop.xlane.xlu0 %949
        %v951 = vsub.f32 %v946, %v950
        %v952 = vmul.f32 %v951, 1.442695
        %v953 = vpow.pop %v952
        %v954 = vsel %vm512, %v953, 0.0
        %955 = vadd.xlane.f32.xlu0 %v954
        %v956 = vpop.xlane.xlu0 %955
        %v957 = vrcp.pop %v956
        %v958 = vmul.f32 %v953, %v957
        %959 = vrot.lane.b32.xlu0 %v510, 112
        %v960 = vpop.permute.xlu0 %959
        %v963 = vsel %vm512, %v958, 0
        %965 = vmatpush.msra.mxu0 0.0
        %966 = vmatpush.msra.mxu0 0.0
        %967 = vmatpush.msra.mxu0 0.0
        %968 = vmatpush.msra.mxu0 0.0
        %969 = vmatpush.msra.mxu0 0.0
        %970 = vmatpush.msra.mxu0 0.0
        %971 = vmatpush.msra.mxu0 0.0
        %972 = vmatpush.msra.mxu0 0.0
        %973 = vmatpush.msra.mxu0 0.0
        %974 = vmatpush.msra.mxu0 0.0
        %975 = vmatpush.msra.mxu0 0.0
        %976 = vmatpush.msra.mxu0 0.0
        %977 = vmatpush.msra.mxu0 0.0
        %978 = vmatpush.msra.mxu0 0.0
        %979 = vmatpush.msra.mxu0 0.0
        %980 = vmatpush.msra.mxu0 %v960
        %981 = vmatmul.f32.gmra.mxu0 %v963
        %v982 = vpop.f32.mrf.mxu0
        %v983 = vadd.f32 0.0, %v982
        %984 = vdwg.mxu0
        %986 = vrot.lane.b32.xlu0 %v983, 16
        %v987 = vpop.permute.xlu0 %986
        %989 = vst.msk [vmem:[#allocation3 + $0x8] sm:$0xff] %vm715, %v987
        %990 = vrot.lane.b32.xlu0 %v456, 104
        %v991 = vpop.permute.xlu0 %990
        %992 = vrot.lane.b32.xlu0 %v483, 104
        %v993 = vpop.permute.xlu0 %992
        %v994 = vsel %vm512, %v991, 0
        %v996 = vsel %vm512, %v993, 0
        %998 = vmatpush.xpose.msra.mxu0 0.0
        %999 = vmatpush.xpose.msra.mxu0 0.0
        %1000 = vmatpush.xpose.msra.mxu0 0.0
        %1001 = vmatpush.xpose.msra.mxu0 0.0
        %1002 = vmatpush.xpose.msra.mxu0 0.0
        %1003 = vmatpush.xpose.msra.mxu0 0.0
        %1004 = vmatpush.xpose.msra.mxu0 0.0
        %1005 = vmatpush.xpose.msra.mxu0 0.0
        %1006 = vmatpush.xpose.msra.mxu0 0.0
        %1007 = vmatpush.xpose.msra.mxu0 0.0
        %1008 = vmatpush.xpose.msra.mxu0 0.0
        %1009 = vmatpush.xpose.msra.mxu0 0.0
        %1010 = vmatpush.xpose.msra.mxu0 0.0
        %1011 = vmatpush.xpose.msra.mxu0 0.0
        %1012 = vmatpush.xpose.msra.mxu0 0.0
        %1013 = vmatpush.xpose.msra.mxu0 %v996
        %1014 = vmatmul.f32.gmra.mxu0 %v994
        %v1015 = vpop.f32.mrf.mxu0
        %v1016 = vadd.f32 0.0, %v1015
        %1017 = vdwg.mxu0
        %v1018 = vsel %vm512, %v1016, -inf
        %1019 = vmax.xlane.f32.xlu0 %v1018
        %v1020 = vpop.xlane.xlu0 %1019
        %v1021 = vsub.f32 %v1016, %v1020
        %v1022 = vmul.f32 %v1021, 1.442695
        %v1023 = vpow.pop %v1022
        %v1024 = vsel %vm512, %v1023, 0.0
        %1025 = vadd.xlane.f32.xlu0 %v1024
        %v1026 = vpop.xlane.xlu0 %1025
        %v1027 = vrcp.pop %v1026
        %v1028 = vmul.f32 %v1023, %v1027
        %1029 = vrot.lane.b32.xlu0 %v510, 104
        %v1030 = vpop.permute.xlu0 %1029
        %v1033 = vsel %vm512, %v1028, 0
        %1035 = vmatpush.msra.mxu0 0.0
        %1036 = vmatpush.msra.mxu0 0.0
        %1037 = vmatpush.msra.mxu0 0.0
        %1038 = vmatpush.msra.mxu0 0.0
        %1039 = vmatpush.msra.mxu0 0.0
        %1040 = vmatpush.msra.mxu0 0.0
        %1041 = vmatpush.msra.mxu0 0.0
        %1042 = vmatpush.msra.mxu0 0.0
        %1043 = vmatpush.msra.mxu0 0.0
        %1044 = vmatpush.msra.mxu0 0.0
        %1045 = vmatpush.msra.mxu0 0.0
        %1046 = vmatpush.msra.mxu0 0.0
        %1047 = vmatpush.msra.mxu0 0.0
        %1048 = vmatpush.msra.mxu0 0.0
        %1049 = vmatpush.msra.mxu0 0.0
        %1050 = vmatpush.msra.mxu0 %v1030
        %1051 = vmatmul.f32.gmra.mxu0 %v1033
        %v1052 = vpop.f32.mrf.mxu0
        %v1053 = vadd.f32 0.0, %v1052
        %1054 = vdwg.mxu0
        %1056 = vrot.lane.b32.xlu0 %v1053, 24
        %v1057 = vpop.permute.xlu0 %1056
        %1059 = vst.msk [vmem:[#allocation3 + $0x8] sm:$0xff] %vm786, %v1057
        %v1060 = vld [vmem:[#allocation3] sm:$0xff]
        %v1061 = vld [vmem:[#allocation3 + $0x8] sm:$0xff]
        %v1062 = vpack.c.bf16 %v1061, %v1060
        %v1063 = vld [vmem:[%s379] sm:$0xf]
        %v1064 = vld [vmem:[%s379 + $0x4] sm:$0xf]
        %v1065 = vld [vmem:[%s379 + $0x8] sm:$0xf]
        %v1066 = vld [vmem:[%s379 + $0xc] sm:$0xf]
        %v1067 = vperm.slane %v413, 3
        %v1072 = vunpack.c.l.b16 %v1063
        %v1073 = vunpack.c.l.b16 %v1064
        %v1074 = vunpack.c.l.b16 %v1065
        %v1075 = vunpack.c.l.b16 %v1066
        %v1076 = vpack.c.b16 %v1073, %v1072
        %v1077 = vpack.c.b16 %v1075, %v1074
        %v1081 = vsel %vm440, %v1062, 0
        %1083 = vmatpush.bf16.msra.mxu0 0
        %1084 = vmatpush.bf16.msra.mxu0 0
        %1085 = vmatpush.bf16.msra.mxu0 0
        %1086 = vmatpush.bf16.msra.mxu0 0
        %1087 = vmatpush.bf16.msra.mxu0 0
        %1088 = vmatpush.bf16.msra.mxu0 0
        %1089 = vmatpush.bf16.msra.mxu0 %v1077
        %1090 = vmatpush.bf16.msra.mxu0 %v1076
        %1091 = vmatmul.bf16.gmra.mxu0 %v1081
        %v1092 = vpop.f32.mrf.mxu0
        %v1093 = vadd.f32 %v1067, %v1092
        %v1094 = vpop.f32.mrf.mxu0
        %v1095 = vadd.f32 %v1067, %v1094
        %1096 = vdwg.mxu0
        %v1097 = vadd.f32 %v410, %v1093
        %v1098 = vadd.f32 %v411, %v1095
        %v1099 = vsel %vm440, %v1097, 0.0
        %1100 = vadd.xlane.f32.xlu0 %v1099
        %v1101 = vpop.xlane.xlu0 %1100
        %v1102 = vsel %vm440, %v1098, 0.0
        %1103 = vadd.xlane.f32.xlu0 %v1102
        %v1104 = vpop.xlane.xlu0 %1103
        %v1105 = vrcp.pop 32.0
        %v1106 = vmul.f32 32.0, %v1105
        %v1107 = vsub.f32 1.0, %v1106
        %v1108 = vmul.f32 %v1105, %v1107
        %v1109 = vadd.f32 %v1105, %v1108
        %vm1110 = vweird.f32 %v1105
        %v1111 = vsel %vm1110, %v1105, %v1109
        %v1112 = vmul.f32 %v1101, %v1111
        %v1113 = vmul.f32 %v1104, %v1111
        %v1114 = vmul.f32 %v1097, %v1097
        %v1115 = vmul.f32 %v1098, %v1098
        %v1116 = vsel %vm440, %v1114, 0.0
        %1117 = vadd.xlane.f32.xlu0 %v1116
        %v1118 = vpop.xlane.xlu0 %1117
        %v1119 = vsel %vm440, %v1115, 0.0
        %1120 = vadd.xlane.f32.xlu0 %v1119
        %v1121 = vpop.xlane.xlu0 %1120
        %v1122 = vmul.f32 %v1118, %v1111
        %v1123 = vmul.f32 %v1121, %v1111
        %v1124 = vmul.f32 %v1112, %v1112
        %v1125 = vmul.f32 %v1113, %v1113
        %v1126 = vsub.f32 %v1122, %v1124
        %v1127 = vsub.f32 %v1123, %v1125
        %v1128 = vsub.f32 %v1097, %v1112
        %v1129 = vsub.f32 %v1098, %v1113
        %v1130 = vadd.f32 %v1126, 1e-05
        %v1131 = vadd.f32 %v1127, 1e-05
        %v1132 = vrsqrt.pop %v1130
        %v1133 = vmul.f32 %v1132, %v1130
        %v1134 = vmul.f32 %v1133, %v1132
        %v1135 = vmul.f32 0.5, %v1134
        %v1136 = vsub.f32 1.5, %v1135
        %v1137 = vmul.f32 %v1132, %v1136
        %vm1138 = vweird.f32 %v1130
        %vm1139 = vweird.f32 %v1132
        %vm1140 = vmor %vm1138, %vm1139
        %v1141 = vsel %vm1140, %v1132, %v1137
        %v1142 = vrsqrt.pop %v1131
        %v1143 = vmul.f32 %v1142, %v1131
        %v1144 = vmul.f32 %v1143, %v1142
        %v1145 = vmul.f32 0.5, %v1144
        %v1146 = vsub.f32 1.5, %v1145
        %v1147 = vmul.f32 %v1142, %v1146
        %vm1148 = vweird.f32 %v1131
        %vm1149 = vweird.f32 %v1142
        %vm1150 = vmor %vm1148, %vm1149
        %v1151 = vsel %vm1150, %v1142, %v1147
        %v1152 = vmul.f32 %v1128, %v1141
        %v1153 = vmul.f32 %v1129, %v1151
        %v1154 = vperm.slane %v413, 4
        %v1155 = vmul.f32 %v1152, %v1154
        %v1156 = vmul.f32 %v1153, %v1154
        %v1157 = vperm.slane %v413, 5
        %v1158 = vadd.f32 %v1155, %v1157
        %v1159 = vadd.f32 %v1156, %v1157
        %v1160 = vpack.c.bf16 %v1159, %v1158
        %v1161 = vld [vmem:[%s384] sm:$0xf]
        %v1162 = vld [vmem:[%s384 + $0x4] sm:$0xf]
        %v1163 = vld [vmem:[%s384 + $0x8] sm:$0xf]
        %v1164 = vld [vmem:[%s384 + $0xc] sm:$0xf]
        %v1165 = vld [vmem:[%s397] sm:$0x1]
        %v1167 = vperm.slane %v1165, 0
        %v1173 = vunpack.c.l.b16 %v1161
        %v1174 = vunpack.c.l.b16 %v1162
        %v1175 = vunpack.c.l.b16 %v1163
        %v1176 = vunpack.c.l.b16 %v1164
        %v1177 = vpack.c.b16 %v1174, %v1173
        %v1178 = vpack.c.b16 %v1176, %v1175
        %v1182 = vsel %vm440, %v1160, 0
        %1184 = vmatpush.bf16.msra.mxu0 0
        %1185 = vmatpush.bf16.msra.mxu0 0
        %1186 = vmatpush.bf16.msra.mxu0 0
        %1187 = vmatpush.bf16.msra.mxu0 0
        %1188 = vmatpush.bf16.msra.mxu0 0
        %1189 = vmatpush.bf16.msra.mxu0 0
        %1190 = vmatpush.bf16.msra.mxu0 %v1178
        %1191 = vmatpush.bf16.msra.mxu0 %v1177
        %1192 = vmatmul.bf16.gmra.mxu0 %v1182
        %v1193 = vpop.f32.mrf.mxu0
        %v1194 = vadd.f32 %v1167, %v1193
        %v1195 = vpop.f32.mrf.mxu0
        %v1196 = vadd.f32 %v1167, %v1195
        %1197 = vdwg.mxu0
        %v1198 = vmax.f32 %v1194, 0.0
        %v1199 = vmax.f32 %v1196, 0.0
        %v1200 = vpack.c.bf16 %v1199, %v1198
        %v1201 = vld [vmem:[%s389] sm:$0xf]
        %v1202 = vld [vmem:[%s389 + $0x4] sm:$0xf]
        %v1203 = vld [vmem:[%s389 + $0x8] sm:$0xf]
        %v1204 = vld [vmem:[%s389 + $0xc] sm:$0xf]
        %v1205 = vld [vmem:[%s389 + $0x10] sm:$0xf]
        %v1206 = vld [vmem:[%s389 + $0x14] sm:$0xf]
        %v1207 = vld [vmem:[%s389 + $0x18] sm:$0xf]
        %v1208 = vld [vmem:[%s389 + $0x1c] sm:$0xf]
        %v1209 = vperm.slane %v413, 6
        %v1218 = vunpack.c.l.b16 %v1201
        %v1219 = vunpack.c.l.b16 %v1202
        %v1220 = vunpack.c.l.b16 %v1203
        %v1221 = vunpack.c.l.b16 %v1204
        %v1222 = vunpack.c.l.b16 %v1205
        %v1223 = vunpack.c.l.b16 %v1206
        %v1224 = vunpack.c.l.b16 %v1207
        %v1225 = vunpack.c.l.b16 %v1208
        %v1226 = vpack.c.b16 %v1219, %v1218
        %v1227 = vpack.c.b16 %v1221, %v1220
        %v1228 = vpack.c.b16 %v1223, %v1222
        %v1229 = vpack.c.b16 %v1225, %v1224
        %vm1234 = vcmask 523264
        %v1236 = vsel %vm1234, %v1200, 0
        %1238 = vmatpush.bf16.msra.mxu0 0
        %1239 = vmatpush.bf16.msra.mxu0 0
        %1240 = vmatpush.bf16.msra.mxu0 0
        %1241 = vmatpush.bf16.msra.mxu0 0
        %1242 = vmatpush.bf16.msra.mxu0 %v1229
        %1243 = vmatpush.bf16.msra.mxu0 %v1228
        %1244 = vmatpush.bf16.msra.mxu0 %v1227
        %1245 = vmatpush.bf16.msra.mxu0 %v1226
        %1246 = vmatmul.bf16.gmra.mxu0 %v1236
        %v1247 = vpop.f32.mrf.mxu0
        %v1248 = vadd.f32 %v1209, %v1247
        %v1249 = vpop.f32.mrf.mxu0
        %v1250 = vadd.f32 %v1209, %v1249
        %1251 = vdwg.mxu0
        %v1252 = vadd.f32 %v1158, %v1248
        %v1253 = vadd.f32 %v1159, %v1250
        %v1254 = vsel %vm440, %v1252, 0.0
        %1255 = vadd.xlane.f32.xlu0 %v1254
        %v1256 = vpop.xlane.xlu0 %1255
        %v1257 = vsel %vm440, %v1253, 0.0
        %1258 = vadd.xlane.f32.xlu0 %v1257
        %v1259 = vpop.xlane.xlu0 %1258
        %v1260 = vmul.f32 %v1256, %v1111
        %v1261 = vmul.f32 %v1259, %v1111
        %v1262 = vmul.f32 %v1252, %v1252
        %v1263 = vmul.f32 %v1253, %v1253
        %v1264 = vsel %vm440, %v1262, 0.0
        %1265 = vadd.xlane.f32.xlu0 %v1264
        %v1266 = vpop.xlane.xlu0 %1265
        %v1267 = vsel %vm440, %v1263, 0.0
        %1268 = vadd.xlane.f32.xlu0 %v1267
        %v1269 = vpop.xlane.xlu0 %1268
        %v1270 = vmul.f32 %v1266, %v1111
        %v1271 = vmul.f32 %v1269, %v1111
        %v1272 = vmul.f32 %v1260, %v1260
        %v1273 = vmul.f32 %v1261, %v1261
        %v1274 = vsub.f32 %v1270, %v1272
        %v1275 = vsub.f32 %v1271, %v1273
        %v1276 = vsub.f32 %v1252, %v1260
        %v1277 = vsub.f32 %v1253, %v1261
        %v1278 = vadd.f32 %v1274, 1e-05
        %v1279 = vadd.f32 %v1275, 1e-05
        %v1280 = vrsqrt.pop %v1278
        %v1281 = vmul.f32 %v1280, %v1278
        %v1282 = vmul.f32 %v1281, %v1280
        %v1283 = vmul.f32 0.5, %v1282
        %v1284 = vsub.f32 1.5, %v1283
        %v1285 = vmul.f32 %v1280, %v1284
        %vm1286 = vweird.f32 %v1278
        %vm1287 = vweird.f32 %v1280
        %vm1288 = vmor %vm1286, %vm1287
        %v1289 = vsel %vm1288, %v1280, %v1285
        %v1290 = vrsqrt.pop %v1279
        %v1291 = vmul.f32 %v1290, %v1279
        %v1292 = vmul.f32 %v1291, %v1290
        %v1293 = vmul.f32 0.5, %v1292
        %v1294 = vsub.f32 1.5, %v1293
        %v1295 = vmul.f32 %v1290, %v1294
        %vm1296 = vweird.f32 %v1279
        %vm1297 = vweird.f32 %v1290
        %vm1298 = vmor %vm1296, %vm1297
        %v1299 = vsel %vm1298, %v1290, %v1295
        %v1300 = vmul.f32 %v1276, %v1289
        %v1301 = vmul.f32 %v1277, %v1299
        %v1302 = vperm.slane %v413, 7
        %v1303 = vmul.f32 %v1300, %v1302
        %v1304 = vmul.f32 %v1301, %v1302
        %v1305 = vperm.slane %v414, 0
        %v1306 = vadd.f32 %v1303, %v1305
        %v1307 = vadd.f32 %v1304, %v1305
        %1308 = vst.msk [vmem:[#allocation2] sm:$0xff] %vm440, %v1306
        %1309 = vst.msk [vmem:[#allocation2 + $0x8] sm:$0xff] %vm440, %v1307
        %p1310 = scmp.eq.s32.totalorder %s24, 1
        // Predicated region
        $region53: #{encoder_forward.1} parent=47 // pred_check
          %p1311 = pneg %p1310
        $region54: #{encoder_forward.1} parent=47 // pred_check_branch
          %1313 = sbr.rel (%p1311) target = $region56
        $region55: #{encoder_forward.1} parent=47 // pred_region
          %1314 = vst.msk [vmem:[#allocation4] sm:$0xff] %vm440, %v1306
          %s1315 = scalar_lea.vmem [#allocation4], 8
          %1316 = vst.msk [vmem:[%s1315] sm:$0xff] %vm440, %v1307
        $region56: #{encoder_forward.1} parent=47 // pred_fallthru
          _
        // Predicated region
        $region57: #{encoder_forward.1} parent=47 // pred_check
          %p1317 = pneg %p231
        $region58: #{encoder_forward.1} parent=47 // pred_check_branch
          %1319 = sbr.rel (%p1317) target = $region60
        $region59: #{encoder_forward.1} parent=47 // pred_region
          %s1320 = smul.u32 2, %s23
          %1322 = vsyncadd [#allocation5], 0
          %s1323 = smul.addr %s1320, 8
          %s1324 = scalar_lea.hbm %s7, %s1323
          %s1325 = sshll.u32 [#allocation4], 4
          %s1326 = int_to_ptr.vmem [resolvable:$true] %s1325
          %s1327 = sshll.u32 %s1324, 4
          %s1328 = int_to_ptr.hbm [resolvable:$true] %s1327
          %1333 = dma.vmem_to_hbm [thread:$0]  %s1326, 256, %s1328, [#allocation5], 128, 128, 8
        $region60: #{encoder_forward.1} parent=47 // pred_fallthru
          _
        // Predicated region
        $region61: #{encoder_forward.1} parent=47 // pred_check
          %p1334 = pneg %p231
        $region62: #{encoder_forward.1} parent=47 // pred_check_branch
          %1336 = sbr.rel (%p1334) target = $region64
        $region63: #{encoder_forward.1} parent=47 // pred_region
          %1338 = dma.done [#allocation5], 256
        $region64: #{encoder_forward.1} parent=47 // pred_fallthru
          _
      $region48: #{encoder_forward.1} parent=5 // pred_fallthru
        _
      %p1339 = scmp.le.s32.totalorder 2, %s14
      // Predicated region
      $region65: #{encoder_forward.1} parent=5 // pred_check
        %p1340 = pneg %p1339
      $region66: #{encoder_forward.1} parent=5 // pred_check_branch
        %1342 = sbr.rel (%p1340) target = $region68
      $region67: #{encoder_forward.1} parent=5 // pred_region
        %s1343 = ssub.s32 %s14, 2
      $region68: #{encoder_forward.1} parent=5 // pred_fallthru
        _
    $region6: #{encoder_forward.1} parent=1 // loop_footer
      %s18 = sadd.s32 1, %s14
    $region7: #{encoder_forward.1} parent=1 // loop_footer_branch
      %13 = sbr.rel target = $region3
    $region8: #{encoder_forward.1} parent=1 // loop_exit
      _
    %1344 = vsyncpa [#allocation5], 1
    %s1345 = scalar_lea.sflag [#allocation5], 1
    %1346 = vsyncpa %s1345, 1

</llo_original>
